<compile_context>
chip_gen: v5e
topology: v5e:2x2
jax: 0.10.0
libtpu: 0.0.40
codegen_flags: <defaults>
</compile_context>

<pallas_src>
import jax
import jax.numpy as jnp
from jax.experimental import pallas as pl
from jax.experimental.pallas import tpu as pltpu


# --------------------------------------------------------------------------
# Fused forward kernel: one batch-row tile (bt*J rows) per grid step.
# --------------------------------------------------------------------------
def _semgcn9_fused_kernel(x_ref, dvec_ref, ablk_ref, win_ref, wres_ref,
                          wout_ref, consts_ref, o_ref):
    M = x_ref.shape[0]                    # bt * J rows
    cin = x_ref.shape[1]
    hid = consts_ref.shape[1]
    cout = o_ref.shape[1]
    n_layers = wres_ref.shape[0]

    a_blk = ablk_ref[...]                 # (M, M) bf16, block-diag adj*(1-I)
    dvec = dvec_ref[...]                  # (M, 1)  f32, diag(adj) per row
    # Hoist the lane broadcast of the diagonal scale once; reused by the
    # 8 hidden gconvs + output gconv (JAX does not CSE broadcast_in_dim).
    dscale = jnp.broadcast_to(dvec, (M, hid))

    def gconv(h, dsc, w0, w1, bias):
        # out = (diag * h) @ W0 + (A_off @ h) @ W1 + b
        # bf16 MXU operands, f32 accumulation; no lane-boundary slices.
        hb = h.astype(jnp.bfloat16)
        ah = jnp.dot(a_blk, hb, preferred_element_type=jnp.float32)   # aggregate
        dh = dsc * h                                                   # diag term
        out = jnp.dot(dh.astype(jnp.bfloat16), w0,
                      preferred_element_type=jnp.float32)
        out = out + jnp.dot(ah.astype(jnp.bfloat16), w1,
                            preferred_element_type=jnp.float32)
        return out + bias

    # ---- input block: gconv -> BatchNorm1d(eval, folded) -> ReLU ----
    h = gconv(x_ref[...], dvec,
              win_ref[0:cin, :], win_ref[cin:, :], consts_ref[0:1, :])
    h = jnp.maximum(h * consts_ref[1:2, :] + consts_ref[2:3, :], 0.0)

    # ---- residual GCN blocks (tiny; statically unrolled, n_layers=4) ----
    for l in range(n_layers):
        wl = wres_ref[l]                                   # (2, 2*hid, hid) bf16
        t = gconv(h, dscale, wl[0, 0:hid, :], wl[0, hid:, :],
                  consts_ref[3 + l:4 + l, :])
        t = gconv(t, dscale, wl[1, 0:hid, :], wl[1, hid:, :],
                  consts_ref[3 + n_layers + l:4 + n_layers + l, :])
        h = h + t

    # ---- output block ----
    out_b = consts_ref[3 + 2 * n_layers:4 + 2 * n_layers, :][:, 0:cout]
    o_ref[...] = gconv(h, dscale, wout_ref[0:hid, :], wout_ref[hid:, :],
                       out_b).astype(o_ref.dtype)


# --------------------------------------------------------------------------
# AttentiveAdjacency (16x16 glue, plain XLA, runs once at build time).
# TODO(synk): AttentiveAdjacency source was not provided; plausible reconstruction.
# --------------------------------------------------------------------------
def attentive_adjacency(adj, attn):
    logits = adj[None, :, :] + attn               # (H, J, J)
    return jnp.mean(jax.nn.softmax(logits, axis=-1), axis=0)


def _pick_batch_tile(B, J, target_rows=256):
    # Size the tile by MXU M-dim (bt*J ~ 128-512 rows).  Small batches run in
    # one grid step; large batches get >=2 "parallel" steps with big tiles.
    bt = max(1, min(B, max(1, target_rows // J)))
    while B % bt:
        bt -= 1
    return bt


# --------------------------------------------------------------------------
# Build: pre-pack all operands once, return a jitted forward(x).
# --------------------------------------------------------------------------
def build_semgcn9_forward(adj, params, batch_size):
    J = adj.shape[0]
    cin = params['in_W'].shape[1]
    hid = params['in_W'].shape[2]
    cout = params['out_W'].shape[2]
    n_layers = len(params['res_blocks'])

    # adjacency attention chain (attention_mid is never used in the forward)
    a = attentive_adjacency(adj, params['attn_input'])
    for attn in params['attn_layers']:
        a = attentive_adjacency(a, attn)

    eye = jnp.eye(J, dtype=jnp.float32)
    diag = jnp.diagonal(a).reshape(J, 1)          # adj*I  -> per-row scale
    adj_off = a * (1.0 - eye)                     # adj*(1-I)

    bt = _pick_batch_tile(batch_size, J)
    rows = bt * J
    grid = (batch_size // bt,)

    dvec = jnp.tile(diag, (bt, 1)).astype(jnp.float32)               # (rows, 1)
    a_blk = jnp.kron(jnp.eye(bt, dtype=jnp.float32),
                     adj_off).astype(jnp.bfloat16)                   # (rows, rows)

    def stack_w(W):   # (2, cin, cout) -> rows [W0; W1], bf16
        return jnp.concatenate([W[0], W[1]], axis=0).astype(jnp.bfloat16)

    w_in = stack_w(params['in_W'])                                   # (2*cin, hid)
    w_out = stack_w(params['out_W'])                                 # (2*hid, cout)
    w_res = jnp.stack([jnp.stack([stack_w(b['Wa']), stack_w(b['Wb'])])
                       for b in params['res_blocks']])               # (L,2,2*hid,hid)

    # one packed per-channel constant block:
    #   rows = [in_b, bn_scale, bn_shift, ba_0..L-1, bb_0..L-1, out_b(padded)]
    eps = 1e-5
    bn_scale = params['bn_gamma'] / jnp.sqrt(params['bn_rv'] + eps)
    bn_shift = params['bn_beta'] - params['bn_rm'] * bn_scale
    out_b_pad = jnp.zeros((hid,), jnp.float32).at[:cout].set(params['out_b'])
    consts = jnp.stack(
        [params['in_b'], bn_scale, bn_shift]
        + [b['ba'] for b in params['res_blocks']]
        + [b['bb'] for b in params['res_blocks']]
        + [out_b_pad]).astype(jnp.float32)                           # (3+2L+1, hid)

    def bcast(shape):
        nd = len(shape)
        return pl.BlockSpec(shape, lambda i, _nd=nd: (0,) * _nd)

    fused = pl.pallas_call(
        _semgcn9_fused_kernel,
        out_shape=jax.ShapeDtypeStruct((batch_size * J, cout), jnp.float32),
        grid=grid,
        in_specs=[
            pl.BlockSpec((rows, cin), lambda i: (i, 0)),   # x row tile
            bcast(dvec.shape),                             # diag(adj) per row
            bcast(a_blk.shape),                            # block-diag adj*(1-I)
            bcast(w_in.shape),                             # input  [W0; W1]
            bcast(w_res.shape),                            # residual weights
            bcast(w_out.shape),                            # output [W0; W1]
            bcast(consts.shape),                           # biases + BN constants
        ],
        out_specs=pl.BlockSpec((rows, cout), lambda i: (i, 0)),
        compiler_params=pltpu.CompilerParams(
            dimension_semantics=("parallel",)),
    )

    @jax.jit
    def forward(x):
        out2d = fused(x.reshape(batch_size * J, cin),
                      dvec, a_blk, w_in, w_res, w_out, consts)
        return out2d.reshape(batch_size, J, cout)

    return forward


# --------------------------------------------------------------------------
# Pure-JAX (f32) reference of the same forward, for validation.
# --------------------------------------------------------------------------
def semgcn9_reference(x, adj, params):
    a = attentive_adjacency(adj, params['attn_input'])
    for attn in params['attn_layers']:
        a = attentive_adjacency(a, attn)
    J = a.shape[0]
    eye = jnp.eye(J, dtype=jnp.float32)
    a_diag = a * eye
    a_off = a * (1.0 - eye)

    def gconv(h, W, b):
        return (jnp.einsum('jk,bkc->bjc', a_diag, h @ W[0])
                + jnp.einsum('jk,bkc->bjc', a_off, h @ W[1]) + b)

    eps = 1e-5
    scale = params['bn_gamma'] / jnp.sqrt(params['bn_rv'] + eps)
    shift = params['bn_beta'] - params['bn_rm'] * scale

    h = gconv(x, params['in_W'], params['in_b'])
    h = jnp.maximum(h * scale + shift, 0.0)
    for blk in params['res_blocks']:
        t = gconv(h, blk['Wa'], blk['ba'])
        t = gconv(t, blk['Wb'], blk['bb'])
        h = h + t
    return gconv(h, params['out_W'], params['out_b'])


# --------------------------------------------------------------------------
# Deterministic parameter initialization (synthetic; shapes follow __init__).
# --------------------------------------------------------------------------
def init_params(key, num_joints=16, coords_dim=(2, 3), hid_dim=32,
                num_layers=4, num_heads=4):
    keys = iter(jax.random.split(key, 64))

    def w(shape, scale=0.1):
        return scale * jax.random.normal(next(keys), shape, dtype=jnp.float32)

    return {
        'attn_input': w((num_heads, num_joints, num_joints)),
        'attn_layers': [w((num_heads, num_joints, num_joints)) for _ in range(3)],
        'in_W': w((2, coords_dim[0], hid_dim)),
        'in_b': w((hid_dim,)),
        'bn_gamma': jnp.ones((hid_dim,), jnp.float32) + w((hid_dim,), 0.05),
        'bn_beta': w((hid_dim,), 0.05),
        'bn_rm': jnp.zeros((hid_dim,), jnp.float32),
        'bn_rv': jnp.ones((hid_dim,), jnp.float32),
        'res_blocks': [
            {'Wa': w((2, hid_dim, hid_dim)), 'ba': w((hid_dim,)),
             'Wb': w((2, hid_dim, hid_dim)), 'bb': w((hid_dim,))}
            for _ in range(num_layers)
        ],
        'out_W': w((2, hid_dim, coords_dim[1])),
        'out_b': w((coords_dim[1],)),
    }


if __name__ == "__main__":
    key = jax.random.PRNGKey(0)
    k_x, k_p = jax.random.split(key)

    B, J, hid = 2, 16, 32

    # deterministic skeleton-style adjacency: chain over 16 joints + self
    # loops, row-normalized
    eye = jnp.eye(J, dtype=jnp.float32)
    idx = jnp.arange(J - 1)
    chain = jnp.zeros((J, J), jnp.float32)
    chain = chain.at[idx, idx + 1].set(1.0).at[idx + 1, idx].set(1.0)
    adj = eye + chain
    adj = adj / jnp.sum(adj, axis=1, keepdims=True)

    x = jax.random.normal(k_x, (B, J, 2), dtype=jnp.float32)   # (B, J, coords_dim[0])
    params = init_params(k_p, num_joints=J, hid_dim=hid)

    forward = build_semgcn9_forward(adj, params, batch_size=B)
    out = jax.block_until_ready(forward(x))
    assert out.shape == (B, J, 3) and out.dtype == jnp.float32

    # validate against the f32 reference (bf16 MXU operands -> loose tolerance)
    ref = jax.block_until_ready(semgcn9_reference(x, adj, params))
    err = float(jnp.max(jnp.abs(out - ref)))
    ref_scale = float(jnp.max(jnp.abs(ref)))
    assert err <= 5e-2 * max(1.0, ref_scale), f"kernel/ref mismatch: {err}"

    print("KERNEL_OK")
</pallas_src>

<mosaic_0001>
module attributes {stable_mosaic.version = 11 : i64} {
  func.func @_semgcn9_fused_kernel(%arg0: i32, %arg1: memref<32x2xf32, #tpu.memory_space<vmem>>, %arg2: memref<32x1xf32, #tpu.memory_space<vmem>>, %arg3: memref<32x32xbf16, #tpu.memory_space<vmem>>, %arg4: memref<4x32xbf16, #tpu.memory_space<vmem>>, %arg5: memref<4x2x64x32xbf16, #tpu.memory_space<vmem>>, %arg6: memref<64x3xbf16, #tpu.memory_space<vmem>>, %arg7: memref<12x32xf32, #tpu.memory_space<vmem>>, %arg8: memref<32x3xf32, #tpu.memory_space<vmem>>) attributes {dimension_semantics = [#tpu.dimension_semantics<parallel>], iteration_bounds = array<i64: 1>, scalar_prefetch = 0 : i64, scratch_operands = 0 : i64, tpu.core_type = #tpu.core_type<tc>, window_params = [{transform_indices = @transform_0, window_bounds = array<i64: 32, 2>}, {pipeline_mode = #tpu.pipeline_mode<synchronous>, transform_indices = @transform_1, window_bounds = array<i64: 32, 1>}, {pipeline_mode = #tpu.pipeline_mode<synchronous>, transform_indices = @transform_2, window_bounds = array<i64: 32, 32>}, {pipeline_mode = #tpu.pipeline_mode<synchronous>, transform_indices = @transform_3, window_bounds = array<i64: 4, 32>}, {pipeline_mode = #tpu.pipeline_mode<synchronous>, transform_indices = @transform_4, window_bounds = array<i64: 4, 2, 64, 32>}, {pipeline_mode = #tpu.pipeline_mode<synchronous>, transform_indices = @transform_5, window_bounds = array<i64: 64, 3>}, {pipeline_mode = #tpu.pipeline_mode<synchronous>, transform_indices = @transform_6, window_bounds = array<i64: 12, 32>}, {transform_indices = @transform_7, window_bounds = array<i64: 32, 3>}]} {
    %c0 = arith.constant 0 : index
    %c0_0 = arith.constant 0 : index
    %0 = vector.load %arg3[%c0, %c0_0] : memref<32x32xbf16, #tpu.memory_space<vmem>>, vector<32x32xbf16>
    %c0_1 = arith.constant 0 : index
    %c0_2 = arith.constant 0 : index
    %1 = vector.load %arg2[%c0_1, %c0_2] : memref<32x1xf32, #tpu.memory_space<vmem>>, vector<32x1xf32>
    %2 = vector.shape_cast %1 : vector<32x1xf32> to vector<32x1xf32>
    %3 = vector.broadcast %2 : vector<32x1xf32> to vector<32x32xf32>
    %c0_3 = arith.constant 0 : index
    %c0_4 = arith.constant 0 : index
    %4 = vector.load %arg1[%c0_3, %c0_4] : memref<32x2xf32, #tpu.memory_space<vmem>>, vector<32x2xf32>
    %c0_5 = arith.constant 0 : index
    %c0_6 = arith.constant 0 : index
    %5 = vector.load %arg4[%c0_5, %c0_6] : memref<4x32xbf16, #tpu.memory_space<vmem>>, vector<2x32xbf16>
    %c2 = arith.constant 2 : index
    %c0_7 = arith.constant 0 : index
    %6 = vector.load %arg4[%c2, %c0_7] : memref<4x32xbf16, #tpu.memory_space<vmem>>, vector<2x32xbf16>
    %c0_8 = arith.constant 0 : index
    %c0_9 = arith.constant 0 : index
    %7 = vector.load %arg7[%c0_8, %c0_9] : memref<12x32xf32, #tpu.memory_space<vmem>>, vector<1x32xf32>
    %8 = arith.truncf %4 : vector<32x2xf32> to vector<32x2xbf16>
    %cst = arith.constant dense<0.000000e+00> : vector<32x2xf32>
    %9 = tpu.matmul %0, %8, %cst {dimension_numbers = #tpu.dot_dimension_numbers<[1], [0], [0], [1], [0, 0, 1, 1], [], []>} : vector<32x32xbf16>, vector<32x2xbf16>, vector<32x2xf32> -> vector<32x2xf32>
    %10 = vector.broadcast %1 : vector<32x1xf32> to vector<32x2xf32>
    %11 = arith.mulf %10, %4 : vector<32x2xf32>
    %12 = arith.truncf %11 : vector<32x2xf32> to vector<32x2xbf16>
    %cst_10 = arith.constant dense<0.000000e+00> : vector<32x32xf32>
    %13 = tpu.matmul %12, %5, %cst_10 {dimension_numbers = #tpu.dot_dimension_numbers<[1], [0], [0], [1], [0, 0, 1, 1], [], []>} : vector<32x2xbf16>, vector<2x32xbf16>, vector<32x32xf32> -> vector<32x32xf32>
    %14 = arith.truncf %9 : vector<32x2xf32> to vector<32x2xbf16>
    %cst_11 = arith.constant dense<0.000000e+00> : vector<32x32xf32>
    %15 = tpu.matmul %14, %6, %cst_11 {dimension_numbers = #tpu.dot_dimension_numbers<[1], [0], [0], [1], [0, 0, 1, 1], [], []>} : vector<32x2xbf16>, vector<2x32xbf16>, vector<32x32xf32> -> vector<32x32xf32>
    %16 = arith.addf %13, %15 : vector<32x32xf32>
    %17 = vector.broadcast %7 : vector<1x32xf32> to vector<32x32xf32>
    %18 = arith.addf %16, %17 : vector<32x32xf32>
    %c1 = arith.constant 1 : index
    %c0_12 = arith.constant 0 : index
    %19 = vector.load %arg7[%c1, %c0_12] : memref<12x32xf32, #tpu.memory_space<vmem>>, vector<1x32xf32>
    %20 = vector.broadcast %19 : vector<1x32xf32> to vector<32x32xf32>
    %21 = arith.mulf %18, %20 : vector<32x32xf32>
    %c2_13 = arith.constant 2 : index
    %c0_14 = arith.constant 0 : index
    %22 = vector.load %arg7[%c2_13, %c0_14] : memref<12x32xf32, #tpu.memory_space<vmem>>, vector<1x32xf32>
    %23 = vector.broadcast %22 : vector<1x32xf32> to vector<32x32xf32>
    %24 = arith.addf %21, %23 : vector<32x32xf32>
    %cst_15 = arith.constant 0.000000e+00 : f32
    %25 = vector.broadcast %cst_15 : f32 to vector<32x32xf32>
    %26 = arith.maximumf %24, %25 : vector<32x32xf32>
    %c0_16 = arith.constant 0 : index
    %c0_17 = arith.constant 0 : index
    %c0_18 = arith.constant 0 : index
    %c0_19 = arith.constant 0 : index
    %27 = vector.load %arg5[%c0_16, %c0_17, %c0_18, %c0_19] : memref<4x2x64x32xbf16, #tpu.memory_space<vmem>>, vector<1x2x64x32xbf16>
    %28 = vector.shape_cast %27 : vector<1x2x64x32xbf16> to vector<2x64x32xbf16>
    %29 = vector.extract_strided_slice %28 {offsets = [0, 0, 0], sizes = [1, 32, 32], strides = [1, 1, 1]} : vector<2x64x32xbf16> to vector<1x32x32xbf16>
    %30 = vector.shape_cast %29 : vector<1x32x32xbf16> to vector<32x32xbf16>
    %31 = vector.extract_strided_slice %28 {offsets = [0, 32, 0], sizes = [1, 32, 32], strides = [1, 1, 1]} : vector<2x64x32xbf16> to vector<1x32x32xbf16>
    %32 = vector.shape_cast %31 : vector<1x32x32xbf16> to vector<32x32xbf16>
    %c3 = arith.constant 3 : index
    %c0_20 = arith.constant 0 : index
    %33 = vector.load %arg7[%c3, %c0_20] : memref<12x32xf32, #tpu.memory_space<vmem>>, vector<1x32xf32>
    %34 = arith.truncf %26 : vector<32x32xf32> to vector<32x32xbf16>
    %cst_21 = arith.constant dense<0.000000e+00> : vector<32x32xf32>
    %35 = tpu.matmul %0, %34, %cst_21 {dimension_numbers = #tpu.dot_dimension_numbers<[1], [0], [0], [1], [0, 0, 1, 1], [], []>} : vector<32x32xbf16>, vector<32x32xbf16>, vector<32x32xf32> -> vector<32x32xf32>
    %36 = arith.mulf %3, %26 : vector<32x32xf32>
    %37 = arith.truncf %36 : vector<32x32xf32> to vector<32x32xbf16>
    %cst_22 = arith.constant dense<0.000000e+00> : vector<32x32xf32>
    %38 = tpu.matmul %37, %30, %cst_22 {dimension_numbers = #tpu.dot_dimension_numbers<[1], [0], [0], [1], [0, 0, 1, 1], [], []>} : vector<32x32xbf16>, vector<32x32xbf16>, vector<32x32xf32> -> vector<32x32xf32>
    %39 = arith.truncf %35 : vector<32x32xf32> to vector<32x32xbf16>
    %cst_23 = arith.constant dense<0.000000e+00> : vector<32x32xf32>
    %40 = tpu.matmul %39, %32, %cst_23 {dimension_numbers = #tpu.dot_dimension_numbers<[1], [0], [0], [1], [0, 0, 1, 1], [], []>} : vector<32x32xbf16>, vector<32x32xbf16>, vector<32x32xf32> -> vector<32x32xf32>
    %41 = arith.addf %38, %40 : vector<32x32xf32>
    %42 = vector.broadcast %33 : vector<1x32xf32> to vector<32x32xf32>
    %43 = arith.addf %41, %42 : vector<32x32xf32>
    %44 = vector.extract_strided_slice %28 {offsets = [1, 0, 0], sizes = [1, 32, 32], strides = [1, 1, 1]} : vector<2x64x32xbf16> to vector<1x32x32xbf16>
    %45 = vector.shape_cast %44 : vector<1x32x32xbf16> to vector<32x32xbf16>
    %46 = vector.extract_strided_slice %28 {offsets = [1, 32, 0], sizes = [1, 32, 32], strides = [1, 1, 1]} : vector<2x64x32xbf16> to vector<1x32x32xbf16>
    %47 = vector.shape_cast %46 : vector<1x32x32xbf16> to vector<32x32xbf16>
    %c7 = arith.constant 7 : index
    %c0_24 = arith.constant 0 : index
    %48 = vector.load %arg7[%c7, %c0_24] : memref<12x32xf32, #tpu.memory_space<vmem>>, vector<1x32xf32>
    %49 = arith.truncf %43 : vector<32x32xf32> to vector<32x32xbf16>
    %cst_25 = arith.constant dense<0.000000e+00> : vector<32x32xf32>
    %50 = tpu.matmul %0, %49, %cst_25 {dimension_numbers = #tpu.dot_dimension_numbers<[1], [0], [0], [1], [0, 0, 1, 1], [], []>} : vector<32x32xbf16>, vector<32x32xbf16>, vector<32x32xf32> -> vector<32x32xf32>
    %51 = arith.mulf %3, %43 : vector<32x32xf32>
    %52 = arith.truncf %51 : vector<32x32xf32> to vector<32x32xbf16>
    %cst_26 = arith.constant dense<0.000000e+00> : vector<32x32xf32>
    %53 = tpu.matmul %52, %45, %cst_26 {dimension_numbers = #tpu.dot_dimension_numbers<[1], [0], [0], [1], [0, 0, 1, 1], [], []>} : vector<32x32xbf16>, vector<32x32xbf16>, vector<32x32xf32> -> vector<32x32xf32>
    %54 = arith.truncf %50 : vector<32x32xf32> to vector<32x32xbf16>
    %cst_27 = arith.constant dense<0.000000e+00> : vector<32x32xf32>
    %55 = tpu.matmul %54, %47, %cst_27 {dimension_numbers = #tpu.dot_dimension_numbers<[1], [0], [0], [1], [0, 0, 1, 1], [], []>} : vector<32x32xbf16>, vector<32x32xbf16>, vector<32x32xf32> -> vector<32x32xf32>
    %56 = arith.addf %53, %55 : vector<32x32xf32>
    %57 = vector.broadcast %48 : vector<1x32xf32> to vector<32x32xf32>
    %58 = arith.addf %56, %57 : vector<32x32xf32>
    %59 = arith.addf %26, %58 : vector<32x32xf32>
    %c1_28 = arith.constant 1 : index
    %c0_29 = arith.constant 0 : index
    %c0_30 = arith.constant 0 : index
    %c0_31 = arith.constant 0 : index
    %60 = vector.load %arg5[%c1_28, %c0_29, %c0_30, %c0_31] : memref<4x2x64x32xbf16, #tpu.memory_space<vmem>>, vector<1x2x64x32xbf16>
    %61 = vector.shape_cast %60 : vector<1x2x64x32xbf16> to vector<2x64x32xbf16>
    %62 = vector.extract_strided_slice %61 {offsets = [0, 0, 0], sizes = [1, 32, 32], strides = [1, 1, 1]} : vector<2x64x32xbf16> to vector<1x32x32xbf16>
    %63 = vector.shape_cast %62 : vector<1x32x32xbf16> to vector<32x32xbf16>
    %64 = vector.extract_strided_slice %61 {offsets = [0, 32, 0], sizes = [1, 32, 32], strides = [1, 1, 1]} : vector<2x64x32xbf16> to vector<1x32x32xbf16>
    %65 = vector.shape_cast %64 : vector<1x32x32xbf16> to vector<32x32xbf16>
    %c4 = arith.constant 4 : index
    %c0_32 = arith.constant 0 : index
    %66 = vector.load %arg7[%c4, %c0_32] : memref<12x32xf32, #tpu.memory_space<vmem>>, vector<1x32xf32>
    %67 = arith.truncf %59 : vector<32x32xf32> to vector<32x32xbf16>
    %cst_33 = arith.constant dense<0.000000e+00> : vector<32x32xf32>
    %68 = tpu.matmul %0, %67, %cst_33 {dimension_numbers = #tpu.dot_dimension_numbers<[1], [0], [0], [1], [0, 0, 1, 1], [], []>} : vector<32x32xbf16>, vector<32x32xbf16>, vector<32x32xf32> -> vector<32x32xf32>
    %69 = arith.mulf %3, %59 : vector<32x32xf32>
    %70 = arith.truncf %69 : vector<32x32xf32> to vector<32x32xbf16>
    %cst_34 = arith.constant dense<0.000000e+00> : vector<32x32xf32>
    %71 = tpu.matmul %70, %63, %cst_34 {dimension_numbers = #tpu.dot_dimension_numbers<[1], [0], [0], [1], [0, 0, 1, 1], [], []>} : vector<32x32xbf16>, vector<32x32xbf16>, vector<32x32xf32> -> vector<32x32xf32>
    %72 = arith.truncf %68 : vector<32x32xf32> to vector<32x32xbf16>
    %cst_35 = arith.constant dense<0.000000e+00> : vector<32x32xf32>
    %73 = tpu.matmul %72, %65, %cst_35 {dimension_numbers = #tpu.dot_dimension_numbers<[1], [0], [0], [1], [0, 0, 1, 1], [], []>} : vector<32x32xbf16>, vector<32x32xbf16>, vector<32x32xf32> -> vector<32x32xf32>
    %74 = arith.addf %71, %73 : vector<32x32xf32>
    %75 = vector.broadcast %66 : vector<1x32xf32> to vector<32x32xf32>
    %76 = arith.addf %74, %75 : vector<32x32xf32>
    %77 = vector.extract_strided_slice %61 {offsets = [1, 0, 0], sizes = [1, 32, 32], strides = [1, 1, 1]} : vector<2x64x32xbf16> to vector<1x32x32xbf16>
    %78 = vector.shape_cast %77 : vector<1x32x32xbf16> to vector<32x32xbf16>
    %79 = vector.extract_strided_slice %61 {offsets = [1, 32, 0], sizes = [1, 32, 32], strides = [1, 1, 1]} : vector<2x64x32xbf16> to vector<1x32x32xbf16>
    %80 = vector.shape_cast %79 : vector<1x32x32xbf16> to vector<32x32xbf16>
    %c8 = arith.constant 8 : index
    %c0_36 = arith.constant 0 : index
    %81 = vector.load %arg7[%c8, %c0_36] : memref<12x32xf32, #tpu.memory_space<vmem>>, vector<1x32xf32>
    %82 = arith.truncf %76 : vector<32x32xf32> to vector<32x32xbf16>
    %cst_37 = arith.constant dense<0.000000e+00> : vector<32x32xf32>
    %83 = tpu.matmul %0, %82, %cst_37 {dimension_numbers = #tpu.dot_dimension_numbers<[1], [0], [0], [1], [0, 0, 1, 1], [], []>} : vector<32x32xbf16>, vector<32x32xbf16>, vector<32x32xf32> -> vector<32x32xf32>
    %84 = arith.mulf %3, %76 : vector<32x32xf32>
    %85 = arith.truncf %84 : vector<32x32xf32> to vector<32x32xbf16>
    %cst_38 = arith.constant dense<0.000000e+00> : vector<32x32xf32>
    %86 = tpu.matmul %85, %78, %cst_38 {dimension_numbers = #tpu.dot_dimension_numbers<[1], [0], [0], [1], [0, 0, 1, 1], [], []>} : vector<32x32xbf16>, vector<32x32xbf16>, vector<32x32xf32> -> vector<32x32xf32>
    %87 = arith.truncf %83 : vector<32x32xf32> to vector<32x32xbf16>
    %cst_39 = arith.constant dense<0.000000e+00> : vector<32x32xf32>
    %88 = tpu.matmul %87, %80, %cst_39 {dimension_numbers = #tpu.dot_dimension_numbers<[1], [0], [0], [1], [0, 0, 1, 1], [], []>} : vector<32x32xbf16>, vector<32x32xbf16>, vector<32x32xf32> -> vector<32x32xf32>
    %89 = arith.addf %86, %88 : vector<32x32xf32>
    %90 = vector.broadcast %81 : vector<1x32xf32> to vector<32x32xf32>
    %91 = arith.addf %89, %90 : vector<32x32xf32>
    %92 = arith.addf %59, %91 : vector<32x32xf32>
    %c2_40 = arith.constant 2 : index
    %c0_41 = arith.constant 0 : index
    %c0_42 = arith.constant 0 : index
    %c0_43 = arith.constant 0 : index
    %93 = vector.load %arg5[%c2_40, %c0_41, %c0_42, %c0_43] : memref<4x2x64x32xbf16, #tpu.memory_space<vmem>>, vector<1x2x64x32xbf16>
    %94 = vector.shape_cast %93 : vector<1x2x64x32xbf16> to vector<2x64x32xbf16>
    %95 = vector.extract_strided_slice %94 {offsets = [0, 0, 0], sizes = [1, 32, 32], strides = [1, 1, 1]} : vector<2x64x32xbf16> to vector<1x32x32xbf16>
    %96 = vector.shape_cast %95 : vector<1x32x32xbf16> to vector<32x32xbf16>
    %97 = vector.extract_strided_slice %94 {offsets = [0, 32, 0], sizes = [1, 32, 32], strides = [1, 1, 1]} : vector<2x64x32xbf16> to vector<1x32x32xbf16>
    %98 = vector.shape_cast %97 : vector<1x32x32xbf16> to vector<32x32xbf16>
    %c5 = arith.constant 5 : index
    %c0_44 = arith.constant 0 : index
    %99 = vector.load %arg7[%c5, %c0_44] : memref<12x32xf32, #tpu.memory_space<vmem>>, vector<1x32xf32>
    %100 = arith.truncf %92 : vector<32x32xf32> to vector<32x32xbf16>
    %cst_45 = arith.constant dense<0.000000e+00> : vector<32x32xf32>
    %101 = tpu.matmul %0, %100, %cst_45 {dimension_numbers = #tpu.dot_dimension_numbers<[1], [0], [0], [1], [0, 0, 1, 1], [], []>} : vector<32x32xbf16>, vector<32x32xbf16>, vector<32x32xf32> -> vector<32x32xf32>
    %102 = arith.mulf %3, %92 : vector<32x32xf32>
    %103 = arith.truncf %102 : vector<32x32xf32> to vector<32x32xbf16>
    %cst_46 = arith.constant dense<0.000000e+00> : vector<32x32xf32>
    %104 = tpu.matmul %103, %96, %cst_46 {dimension_numbers = #tpu.dot_dimension_numbers<[1], [0], [0], [1], [0, 0, 1, 1], [], []>} : vector<32x32xbf16>, vector<32x32xbf16>, vector<32x32xf32> -> vector<32x32xf32>
    %105 = arith.truncf %101 : vector<32x32xf32> to vector<32x32xbf16>
    %cst_47 = arith.constant dense<0.000000e+00> : vector<32x32xf32>
    %106 = tpu.matmul %105, %98, %cst_47 {dimension_numbers = #tpu.dot_dimension_numbers<[1], [0], [0], [1], [0, 0, 1, 1], [], []>} : vector<32x32xbf16>, vector<32x32xbf16>, vector<32x32xf32> -> vector<32x32xf32>
    %107 = arith.addf %104, %106 : vector<32x32xf32>
    %108 = vector.broadcast %99 : vector<1x32xf32> to vector<32x32xf32>
    %109 = arith.addf %107, %108 : vector<32x32xf32>
    %110 = vector.extract_strided_slice %94 {offsets = [1, 0, 0], sizes = [1, 32, 32], strides = [1, 1, 1]} : vector<2x64x32xbf16> to vector<1x32x32xbf16>
    %111 = vector.shape_cast %110 : vector<1x32x32xbf16> to vector<32x32xbf16>
    %112 = vector.extract_strided_slice %94 {offsets = [1, 32, 0], sizes = [1, 32, 32], strides = [1, 1, 1]} : vector<2x64x32xbf16> to vector<1x32x32xbf16>
    %113 = vector.shape_cast %112 : vector<1x32x32xbf16> to vector<32x32xbf16>
    %c9 = arith.constant 9 : index
    %c0_48 = arith.constant 0 : index
    %114 = vector.load %arg7[%c9, %c0_48] : memref<12x32xf32, #tpu.memory_space<vmem>>, vector<1x32xf32>
    %115 = arith.truncf %109 : vector<32x32xf32> to vector<32x32xbf16>
    %cst_49 = arith.constant dense<0.000000e+00> : vector<32x32xf32>
    %116 = tpu.matmul %0, %115, %cst_49 {dimension_numbers = #tpu.dot_dimension_numbers<[1], [0], [0], [1], [0, 0, 1, 1], [], []>} : vector<32x32xbf16>, vector<32x32xbf16>, vector<32x32xf32> -> vector<32x32xf32>
    %117 = arith.mulf %3, %109 : vector<32x32xf32>
    %118 = arith.truncf %117 : vector<32x32xf32> to vector<32x32xbf16>
    %cst_50 = arith.constant dense<0.000000e+00> : vector<32x32xf32>
    %119 = tpu.matmul %118, %111, %cst_50 {dimension_numbers = #tpu.dot_dimension_numbers<[1], [0], [0], [1], [0, 0, 1, 1], [], []>} : vector<32x32xbf16>, vector<32x32xbf16>, vector<32x32xf32> -> vector<32x32xf32>
    %120 = arith.truncf %116 : vector<32x32xf32> to vector<32x32xbf16>
    %cst_51 = arith.constant dense<0.000000e+00> : vector<32x32xf32>
    %121 = tpu.matmul %120, %113, %cst_51 {dimension_numbers = #tpu.dot_dimension_numbers<[1], [0], [0], [1], [0, 0, 1, 1], [], []>} : vector<32x32xbf16>, vector<32x32xbf16>, vector<32x32xf32> -> vector<32x32xf32>
    %122 = arith.addf %119, %121 : vector<32x32xf32>
    %123 = vector.broadcast %114 : vector<1x32xf32> to vector<32x32xf32>
    %124 = arith.addf %122, %123 : vector<32x32xf32>
    %125 = arith.addf %92, %124 : vector<32x32xf32>
    %c3_52 = arith.constant 3 : index
    %c0_53 = arith.constant 0 : index
    %c0_54 = arith.constant 0 : index
    %c0_55 = arith.constant 0 : index
    %126 = vector.load %arg5[%c3_52, %c0_53, %c0_54, %c0_55] : memref<4x2x64x32xbf16, #tpu.memory_space<vmem>>, vector<1x2x64x32xbf16>
    %127 = vector.shape_cast %126 : vector<1x2x64x32xbf16> to vector<2x64x32xbf16>
    %128 = vector.extract_strided_slice %127 {offsets = [0, 0, 0], sizes = [1, 32, 32], strides = [1, 1, 1]} : vector<2x64x32xbf16> to vector<1x32x32xbf16>
    %129 = vector.shape_cast %128 : vector<1x32x32xbf16> to vector<32x32xbf16>
    %130 = vector.extract_strided_slice %127 {offsets = [0, 32, 0], sizes = [1, 32, 32], strides = [1, 1, 1]} : vector<2x64x32xbf16> to vector<1x32x32xbf16>
    %131 = vector.shape_cast %130 : vector<1x32x32xbf16> to vector<32x32xbf16>
    %c6 = arith.constant 6 : index
    %c0_56 = arith.constant 0 : index
    %132 = vector.load %arg7[%c6, %c0_56] : memref<12x32xf32, #tpu.memory_space<vmem>>, vector<1x32xf32>
    %133 = arith.truncf %125 : vector<32x32xf32> to vector<32x32xbf16>
    %cst_57 = arith.constant dense<0.000000e+00> : vector<32x32xf32>
    %134 = tpu.matmul %0, %133, %cst_57 {dimension_numbers = #tpu.dot_dimension_numbers<[1], [0], [0], [1], [0, 0, 1, 1], [], []>} : vector<32x32xbf16>, vector<32x32xbf16>, vector<32x32xf32> -> vector<32x32xf32>
    %135 = arith.mulf %3, %125 : vector<32x32xf32>
    %136 = arith.truncf %135 : vector<32x32xf32> to vector<32x32xbf16>
    %cst_58 = arith.constant dense<0.000000e+00> : vector<32x32xf32>
    %137 = tpu.matmul %136, %129, %cst_58 {dimension_numbers = #tpu.dot_dimension_numbers<[1], [0], [0], [1], [0, 0, 1, 1], [], []>} : vector<32x32xbf16>, vector<32x32xbf16>, vector<32x32xf32> -> vector<32x32xf32>
    %138 = arith.truncf %134 : vector<32x32xf32> to vector<32x32xbf16>
    %cst_59 = arith.constant dense<0.000000e+00> : vector<32x32xf32>
    %139 = tpu.matmul %138, %131, %cst_59 {dimension_numbers = #tpu.dot_dimension_numbers<[1], [0], [0], [1], [0, 0, 1, 1], [], []>} : vector<32x32xbf16>, vector<32x32xbf16>, vector<32x32xf32> -> vector<32x32xf32>
    %140 = arith.addf %137, %139 : vector<32x32xf32>
    %141 = vector.broadcast %132 : vector<1x32xf32> to vector<32x32xf32>
    %142 = arith.addf %140, %141 : vector<32x32xf32>
    %143 = vector.extract_strided_slice %127 {offsets = [1, 0, 0], sizes = [1, 32, 32], strides = [1, 1, 1]} : vector<2x64x32xbf16> to vector<1x32x32xbf16>
    %144 = vector.shape_cast %143 : vector<1x32x32xbf16> to vector<32x32xbf16>
    %145 = vector.extract_strided_slice %127 {offsets = [1, 32, 0], sizes = [1, 32, 32], strides = [1, 1, 1]} : vector<2x64x32xbf16> to vector<1x32x32xbf16>
    %146 = vector.shape_cast %145 : vector<1x32x32xbf16> to vector<32x32xbf16>
    %c10 = arith.constant 10 : index
    %c0_60 = arith.constant 0 : index
    %147 = vector.load %arg7[%c10, %c0_60] : memref<12x32xf32, #tpu.memory_space<vmem>>, vector<1x32xf32>
    %148 = arith.truncf %142 : vector<32x32xf32> to vector<32x32xbf16>
    %cst_61 = arith.constant dense<0.000000e+00> : vector<32x32xf32>
    %149 = tpu.matmul %0, %148, %cst_61 {dimension_numbers = #tpu.dot_dimension_numbers<[1], [0], [0], [1], [0, 0, 1, 1], [], []>} : vector<32x32xbf16>, vector<32x32xbf16>, vector<32x32xf32> -> vector<32x32xf32>
    %150 = arith.mulf %3, %142 : vector<32x32xf32>
    %151 = arith.truncf %150 : vector<32x32xf32> to vector<32x32xbf16>
    %cst_62 = arith.constant dense<0.000000e+00> : vector<32x32xf32>
    %152 = tpu.matmul %151, %144, %cst_62 {dimension_numbers = #tpu.dot_dimension_numbers<[1], [0], [0], [1], [0, 0, 1, 1], [], []>} : vector<32x32xbf16>, vector<32x32xbf16>, vector<32x32xf32> -> vector<32x32xf32>
    %153 = arith.truncf %149 : vector<32x32xf32> to vector<32x32xbf16>
    %cst_63 = arith.constant dense<0.000000e+00> : vector<32x32xf32>
    %154 = tpu.matmul %153, %146, %cst_63 {dimension_numbers = #tpu.dot_dimension_numbers<[1], [0], [0], [1], [0, 0, 1, 1], [], []>} : vector<32x32xbf16>, vector<32x32xbf16>, vector<32x32xf32> -> vector<32x32xf32>
    %155 = arith.addf %152, %154 : vector<32x32xf32>
    %156 = vector.broadcast %147 : vector<1x32xf32> to vector<32x32xf32>
    %157 = arith.addf %155, %156 : vector<32x32xf32>
    %158 = arith.addf %125, %157 : vector<32x32xf32>
    %c11 = arith.constant 11 : index
    %c0_64 = arith.constant 0 : index
    %159 = vector.load %arg7[%c11, %c0_64] : memref<12x32xf32, #tpu.memory_space<vmem>>, vector<1x32xf32>
    %160 = vector.extract_strided_slice %159 {offsets = [0, 0], sizes = [1, 3], strides = [1, 1]} : vector<1x32xf32> to vector<1x3xf32>
    %c0_65 = arith.constant 0 : index
    %c0_66 = arith.constant 0 : index
    %161 = vector.load %arg6[%c0_65, %c0_66] : memref<64x3xbf16, #tpu.memory_space<vmem>>, vector<32x3xbf16>
    %c32 = arith.constant 32 : index
    %c0_67 = arith.constant 0 : index
    %162 = vector.load %arg6[%c32, %c0_67] : memref<64x3xbf16, #tpu.memory_space<vmem>>, vector<32x3xbf16>
    %163 = arith.truncf %158 : vector<32x32xf32> to vector<32x32xbf16>
    %cst_68 = arith.constant dense<0.000000e+00> : vector<32x32xf32>
    %164 = tpu.matmul %0, %163, %cst_68 {dimension_numbers = #tpu.dot_dimension_numbers<[1], [0], [0], [1], [0, 0, 1, 1], [], []>} : vector<32x32xbf16>, vector<32x32xbf16>, vector<32x32xf32> -> vector<32x32xf32>
    %165 = arith.mulf %3, %158 : vector<32x32xf32>
    %166 = arith.truncf %165 : vector<32x32xf32> to vector<32x32xbf16>
    %cst_69 = arith.constant dense<0.000000e+00> : vector<32x3xf32>
    %167 = tpu.matmul %166, %161, %cst_69 {dimension_numbers = #tpu.dot_dimension_numbers<[1], [0], [0], [1], [0, 0, 1, 1], [], []>} : vector<32x32xbf16>, vector<32x3xbf16>, vector<32x3xf32> -> vector<32x3xf32>
    %168 = arith.truncf %164 : vector<32x32xf32> to vector<32x32xbf16>
    %cst_70 = arith.constant dense<0.000000e+00> : vector<32x3xf32>
    %169 = tpu.matmul %168, %162, %cst_70 {dimension_numbers = #tpu.dot_dimension_numbers<[1], [0], [0], [1], [0, 0, 1, 1], [], []>} : vector<32x32xbf16>, vector<32x3xbf16>, vector<32x3xf32> -> vector<32x3xf32>
    %170 = arith.addf %167, %169 : vector<32x3xf32>
    %171 = vector.broadcast %160 : vector<1x3xf32> to vector<32x3xf32>
    %172 = arith.addf %170, %171 : vector<32x3xf32>
    %c0_71 = arith.constant 0 : index
    %c0_72 = arith.constant 0 : index
    %173 = vector.load %arg8[%c0_71, %c0_72] : memref<32x3xf32, #tpu.memory_space<vmem>>, vector<32x3xf32>
    tpu.vector_store %arg8[%c0_71, %c0_72], %172 {strides = array<i32>} : memref<32x3xf32, #tpu.memory_space<vmem>>, vector<32x3xf32>,
    return
  }
  func.func @transform_0(%arg0: i32) -> (i32, i32) {
    %c0_i32 = arith.constant 0 : i32
    %c0_i32_0 = arith.constant 0 : i32
    return %arg0, %c0_i32 : i32, i32
  }
  func.func @transform_1(%arg0: i32) -> (i32, i32) {
    %c0_i32 = arith.constant 0 : i32
    %c0_i32_0 = arith.constant 0 : i32
    %c0_i32_1 = arith.constant 0 : i32
    return %c0_i32, %c0_i32_0 : i32, i32
  }
  func.func @transform_2(%arg0: i32) -> (i32, i32) {
    %c0_i32 = arith.constant 0 : i32
    %c0_i32_0 = arith.constant 0 : i32
    %c0_i32_1 = arith.constant 0 : i32
    return %c0_i32, %c0_i32_0 : i32, i32
  }
  func.func @transform_3(%arg0: i32) -> (i32, i32) {
    %c0_i32 = arith.constant 0 : i32
    %c0_i32_0 = arith.constant 0 : i32
    %c0_i32_1 = arith.constant 0 : i32
    return %c0_i32, %c0_i32_0 : i32, i32
  }
  func.func @transform_4(%arg0: i32) -> (i32, i32, i32, i32) {
    %c0_i32 = arith.constant 0 : i32
    %c0_i32_0 = arith.constant 0 : i32
    %c0_i32_1 = arith.constant 0 : i32
    %c0_i32_2 = arith.constant 0 : i32
    %c0_i32_3 = arith.constant 0 : i32
    return %c0_i32, %c0_i32_0, %c0_i32_1, %c0_i32_2 : i32, i32, i32, i32
  }
  func.func @transform_5(%arg0: i32) -> (i32, i32) {
    %c0_i32 = arith.constant 0 : i32
    %c0_i32_0 = arith.constant 0 : i32
    %c0_i32_1 = arith.constant 0 : i32
    return %c0_i32, %c0_i32_0 : i32, i32
  }
  func.func @transform_6(%arg0: i32) -> (i32, i32) {
    %c0_i32 = arith.constant 0 : i32
    %c0_i32_0 = arith.constant 0 : i32
    %c0_i32_1 = arith.constant 0 : i32
    return %c0_i32, %c0_i32_0 : i32, i32
  }
  func.func @transform_7(%arg0: i32) -> (i32, i32) {
    %c0_i32 = arith.constant 0 : i32
    %c0_i32_0 = arith.constant 0 : i32
    return %arg0, %c0_i32 : i32, i32
  }
}

</mosaic_0001>

<llo_original>
// kernel: forward.1
$region0: #{forward.1}
  #allocation0 [shape = 'u32[]', space=smem, size = 0x4, offset = 0x4, fixed_abs, tag = 'smem constant byte address 0x4 - core index']
  #allocation1 [shape = 'u32[72,128]{1,0:T(1,128)}', space=vmem, size = 0x9000, scoped, tag = 'internal scratch']
  %s0 = inlined_call_operand.vmem [shape: f32[32,2], index: 0, kind: input, shape index: {}]
  %s1 = inlined_call_operand.hbm [shape: f32[32,1], index: 1, kind: input, shape index: {}]
  %s2 = inlined_call_operand.hbm [shape: bf16[32,32], index: 2, kind: input, shape index: {}]
  %s3 = inlined_call_operand.vmem [shape: bf16[4,32], index: 3, kind: input, shape index: {}]
  %s4 = inlined_call_operand.hbm [shape: bf16[4,2,64,32], index: 4, kind: input, shape index: {}]
  %s5 = inlined_call_operand.vmem [shape: bf16[64,3], index: 5, kind: input, shape index: {}]
  %s6 = inlined_call_operand.hbm [shape: f32[12,32], index: 6, kind: input, shape index: {}]
  %s7 = inlined_call_operand.vmem [shape: f32[32,3], index: 7, kind: output, shape index: {}]
  %s8 = sld [smem:[#allocation0]]
  $region54: #{forward.1} parent=0
    _
  %s10 = ssub.s32 1, %s8
  %s11 = scalar_select 0, %s10, %s8
  $region1: #{forward.1} parent=0
    #allocation2 [shape = 'u8[16384]{0}', space=vmem, size = 0x4000, scoped, tag = 'input window, operand 1, single buffered']
    #allocation3 [shape = 's32[1]{0}', space=sflag, size = 0x4, scoped, tag = 'scoped memory for forward.1']
    #allocation4 [shape = 'u8[8192]{0}', space=vmem, size = 0x2000, scoped, tag = 'input window, operand 2, single buffered']
    #allocation5 [shape = 's32[1]{0}', space=sflag, size = 0x4, scoped, tag = 'scoped memory for forward.1']
    #allocation6 [shape = 'u8[131072]{0}', space=vmem, size = 0x20000, scoped, tag = 'input window, operand 4, single buffered']
    #allocation7 [shape = 'u8[8192]{0}', space=vmem, size = 0x2000, scoped, tag = 'input window, operand 6, single buffered']
    #allocation8 [shape = 's32[1]{0}', space=sflag, size = 0x4, scoped, tag = 'scoped memory for forward.1']
    %12 = vsyncpa [#allocation3], 0
    %13 = vsyncpa [#allocation5], 0
    %14 = vsyncpa [#allocation8], 0
    // Predicated region
    $region2: #{forward.1} parent=1 // pred_check
      _
    $region3: #{forward.1} parent=1 // pred_check_branch
      %16 = sbr.rel (0) target = $region5
    $region4: #{forward.1} parent=1 // pred_region
      _
    $region5: #{forward.1} parent=1 // pred_fallthru
      _
    // Predicated region
    $region6: #{forward.1} parent=1 // pred_check
      _
    $region7: #{forward.1} parent=1 // pred_check_branch
      %18 = sbr.rel (0) target = $region9
    $region8: #{forward.1} parent=1 // pred_region
      %20 = vsyncadd [#allocation3], 0
      %s21 = sshll.u32 %s1, 4
      %s22 = int_to_ptr.hbm [resolvable:$true] %s21
      %s23 = sshll.u32 [#allocation2], 4
      %s24 = int_to_ptr.vmem [resolvable:$true] %s23
      %29 = dma.hbm_to_vmem [thread:$0]  %s22, 512, %s24, [#allocation3], 128, 128, 8
    $region9: #{forward.1} parent=1 // pred_fallthru
      _
    // Predicated region
    $region10: #{forward.1} parent=1 // pred_check
      _
    $region11: #{forward.1} parent=1 // pred_check_branch
      %31 = sbr.rel (0) target = $region13
    $region12: #{forward.1} parent=1 // pred_region
      %33 = vsyncadd [#allocation5], 0
      %s34 = sshll.u32 %s2, 4
      %s35 = int_to_ptr.hbm [resolvable:$true] %s34
      %s36 = sshll.u32 [#allocation4], 4
      %s37 = int_to_ptr.vmem [resolvable:$true] %s36
      %42 = dma.hbm_to_vmem [thread:$0]  %s35, 256, %s37, [#allocation5], 64, 64, 4
    $region13: #{forward.1} parent=1 // pred_fallthru
      _
    // Predicated region
    $region14: #{forward.1} parent=1 // pred_check
      _
    $region15: #{forward.1} parent=1 // pred_check_branch
      %44 = sbr.rel (0) target = $region17
    $region16: #{forward.1} parent=1 // pred_region
      _
    $region17: #{forward.1} parent=1 // pred_fallthru
      _
    // Predicated region
    $region18: #{forward.1} parent=1 // pred_check
      _
    $region19: #{forward.1} parent=1 // pred_check_branch
      %46 = sbr.rel (0) target = $region21
    $region20: #{forward.1} parent=1 // pred_region
      %48 = vsyncadd [#allocation5], 0
      %s49 = sshll.u32 %s4, 4
      %s50 = int_to_ptr.hbm [resolvable:$true] %s49
      %s51 = sshll.u32 [#allocation6], 4
      %s52 = int_to_ptr.vmem [resolvable:$true] %s51
      %57 = dma.hbm_to_vmem [thread:$0]  %s50, 4096, %s52, [#allocation5], 64, 64, 4
    $region21: #{forward.1} parent=1 // pred_fallthru
      _
    // Predicated region
    $region22: #{forward.1} parent=1 // pred_check
      _
    $region23: #{forward.1} parent=1 // pred_check_branch
      %59 = sbr.rel (0) target = $region25
    $region24: #{forward.1} parent=1 // pred_region
      _
    $region25: #{forward.1} parent=1 // pred_fallthru
      _
    // Predicated region
    $region26: #{forward.1} parent=1 // pred_check
      _
    $region27: #{forward.1} parent=1 // pred_check_branch
      %61 = sbr.rel (0) target = $region29
    $region28: #{forward.1} parent=1 // pred_region
      %63 = vsyncadd [#allocation8], 0
      %s64 = sshll.u32 %s6, 4
      %s65 = int_to_ptr.hbm [resolvable:$true] %s64
      %s66 = sshll.u32 [#allocation7], 4
      %s67 = int_to_ptr.vmem [resolvable:$true] %s66
      %72 = dma.hbm_to_vmem [thread:$0]  %s65, 256, %s67, [#allocation8], 128, 128, 8
    $region29: #{forward.1} parent=1 // pred_fallthru
      _
    // Predicated region
    $region30: #{forward.1} parent=1 // pred_check
      _
    $region31: #{forward.1} parent=1 // pred_check_branch
      %74 = sbr.rel (0) target = $region33
    $region32: #{forward.1} parent=1 // pred_region
      %76 = dma.done [#allocation3], 512
    $region33: #{forward.1} parent=1 // pred_fallthru
      _
    // Predicated region
    $region34: #{forward.1} parent=1 // pred_check
      _
    $region35: #{forward.1} parent=1 // pred_check_branch
      %78 = sbr.rel (0) target = $region37
    $region36: #{forward.1} parent=1 // pred_region
      %80 = dma.done [#allocation5], 256
    $region37: #{forward.1} parent=1 // pred_fallthru
      _
    // Predicated region
    $region38: #{forward.1} parent=1 // pred_check
      _
    $region39: #{forward.1} parent=1 // pred_check_branch
      %82 = sbr.rel (0) target = $region41
    $region40: #{forward.1} parent=1 // pred_region
      %84 = dma.done [#allocation5], 4096
    $region41: #{forward.1} parent=1 // pred_fallthru
      _
    // Predicated region
    $region42: #{forward.1} parent=1 // pred_check
      _
    $region43: #{forward.1} parent=1 // pred_check_branch
      %86 = sbr.rel (0) target = $region45
    $region44: #{forward.1} parent=1 // pred_region
      %88 = dma.done [#allocation8], 256
    $region45: #{forward.1} parent=1 // pred_fallthru
      _
    %v90 = vld [vmem:[#allocation4] sm:$0xf]
    %v91 = vld [vmem:[#allocation4 + $0x4] sm:$0xf]
    %v92 = vld [vmem:[#allocation4 + $0x8] sm:$0xf]
    %v93 = vld [vmem:[#allocation4 + $0xc] sm:$0xf]
    %v94 = vld [vmem:[#allocation2] sm:$0xff]
    %v95 = vld [vmem:[#allocation2 + $0x8] sm:$0xff]
    %v96 = vld [vmem:[#allocation2 + $0x10] sm:$0xff]
    %v97 = vld [vmem:[#allocation2 + $0x18] sm:$0xff]
    %99 = vset.pattern.permute.xlu0 0
    %100 = vperm.xlu0 %99, %v94
    %v101 = vpop.permute.xlu0 %100
    %104 = vset.pattern.permute.xlu0 0
    %105 = vperm.xlu0 %104, %v95
    %v106 = vpop.permute.xlu0 %105
    %109 = vset.pattern.permute.xlu0 0
    %110 = vperm.xlu0 %109, %v96
    %v111 = vpop.permute.xlu0 %110
    %114 = vset.pattern.permute.xlu0 0
    %115 = vperm.xlu0 %114, %v97
    %v116 = vpop.permute.xlu0 %115
    %v118 = vld [vmem:[%s0] sm:$0xff]
    %v119 = vld [vmem:[%s0 + $0x8] sm:$0xff]
    %v120 = vld [vmem:[%s0 + $0x10] sm:$0xff]
    %v121 = vld [vmem:[%s0 + $0x18] sm:$0xff]
    %v122 = vld [vmem:[%s3] sm:$0x1]
    %v123 = vld [vmem:[%s3] sm:$0x2]
    %v124 = vld [vmem:[#allocation7] sm:$0x1]
    %v125 = vpack.c.bf16 %v119, %v118
    %v126 = vpack.c.bf16 %v121, %v120
    %v131 = vunpack.c.l.b16 %v90
    %v132 = vunpack.c.l.b16 %v91
    %v133 = vunpack.c.l.b16 %v92
    %v134 = vunpack.c.l.b16 %v93
    %v135 = vpack.c.b16 %v132, %v131
    %v136 = vpack.c.b16 %v134, %v133
    %vm137 = vcmask 261120
    %v139 = vsel %vm137, %v135, 0
    %v142 = vsel %vm137, %v136, 0
    %144 = vmatpush.bf16.msra.mxu0 0
    %145 = vmatpush.bf16.msra.mxu0 0
    %146 = vmatpush.bf16.msra.mxu0 0
    %147 = vmatpush.bf16.msra.mxu0 0
    %148 = vmatpush.bf16.msra.mxu0 0
    %149 = vmatpush.bf16.msra.mxu0 0
    %150 = vmatpush.bf16.msra.mxu0 %v126
    %151 = vmatpush.bf16.msra.mxu0 %v125
    %152 = vmatmul.bf16.gmra.mxu0 %v139
    %v153 = vpop.f32.mrf.mxu0
    %v154 = vadd.f32 0.0, %v153
    %v155 = vpop.f32.mrf.mxu0
    %v156 = vadd.f32 0.0, %v155
    %157 = vmatmul.bf16.gmra.mxu0 %v142
    %v158 = vpop.f32.mrf.mxu0
    %v159 = vadd.f32 0.0, %v158
    %v160 = vpop.f32.mrf.mxu0
    %v161 = vadd.f32 0.0, %v160
    %162 = vdwg.mxu0
    %v163 = vmul.f32 %v101, %v118
    %v164 = vmul.f32 %v106, %v119
    %v165 = vmul.f32 %v111, %v120
    %v166 = vmul.f32 %v116, %v121
    %v167 = vpack.c.bf16 %v164, %v163
    %v168 = vpack.c.bf16 %v166, %v165
    %v169 = vpack.c.bf16 %v156, %v154
    %v170 = vpack.c.bf16 %v161, %v159
    %172 = vst [vmem:[#allocation1] ss:$4 sm:$0xff] %v123
    %v173 = vld.sshfl [vmem:[#allocation1] sm:$0xff pattern:$0x73625140]
    %v175 = vrot.slane %v173, 1
    %vm176 = vcmask 15360
    %v178 = vsel %vm176, %v169, 0
    %v181 = vsel %vm176, %v170, 0
    %vm183 = vcmask 1040384
    %v185 = vsel %vm183, %v175, 0
    %187 = vmatpush.bf16.msra.mxu0 0
    %188 = vmatpush.bf16.msra.mxu0 0
    %189 = vmatpush.bf16.msra.mxu0 0
    %190 = vmatpush.bf16.msra.mxu0 0
    %191 = vmatpush.bf16.msra.mxu0 0
    %192 = vmatpush.bf16.msra.mxu0 0
    %193 = vmatpush.bf16.msra.mxu0 0
    %194 = vmatpush.bf16.msra.mxu0 %v185
    %195 = vmatmul.bf16.gmra.mxu0 %v178
    %v196 = vpop.f32.mrf.mxu0
    %v197 = vadd.f32 0.0, %v196
    %v198 = vpop.f32.mrf.mxu0
    %v199 = vadd.f32 0.0, %v198
    %200 = vmatmul.bf16.gmra.mxu0 %v181
    %v201 = vpop.f32.mrf.mxu0
    %v202 = vadd.f32 0.0, %v201
    %v203 = vpop.f32.mrf.mxu0
    %v204 = vadd.f32 0.0, %v203
    %205 = vdwg.mxu0
    %v207 = vsel %vm176, %v167, 0
    %v210 = vsel %vm176, %v168, 0
    %v213 = vsel %vm183, %v122, 0
    %215 = vmatpush.bf16.msra.mxu0 0
    %216 = vmatpush.bf16.msra.mxu0 0
    %217 = vmatpush.bf16.msra.mxu0 0
    %218 = vmatpush.bf16.msra.mxu0 0
    %219 = vmatpush.bf16.msra.mxu0 0
    %220 = vmatpush.bf16.msra.mxu0 0
    %221 = vmatpush.bf16.msra.mxu0 0
    %222 = vmatpush.bf16.msra.mxu0 %v213
    %223 = vmatmul.bf16.gmra.mxu0 %v207
    %v224 = vpop.f32.mrf.mxu0
    %v225 = vadd.f32 %v197, %v224
    %v226 = vpop.f32.mrf.mxu0
    %v227 = vadd.f32 %v199, %v226
    %228 = vmatmul.bf16.gmra.mxu0 %v210
    %v229 = vpop.f32.mrf.mxu0
    %v230 = vadd.f32 %v202, %v229
    %v231 = vpop.f32.mrf.mxu0
    %v232 = vadd.f32 %v204, %v231
    %233 = vdwg.mxu0
    %v234 = vperm.slane %v124, 0
    %v235 = vadd.f32 %v225, %v234
    %v236 = vadd.f32 %v227, %v234
    %v237 = vadd.f32 %v230, %v234
    %v238 = vadd.f32 %v232, %v234
    %v239 = vld [vmem:[#allocation7 + $0x1] sm:$0x1]
    %v240 = vperm.slane %v239, 0
    %v241 = vmul.f32 %v235, %v240
    %v242 = vmul.f32 %v236, %v240
    %v243 = vmul.f32 %v237, %v240
    %v244 = vmul.f32 %v238, %v240
    %v245 = vld [vmem:[#allocation7 + $0x2] sm:$0x1]
    %v246 = vperm.slane %v245, 0
    %v247 = vadd.f32 %v241, %v246
    %v248 = vadd.f32 %v242, %v246
    %v249 = vadd.f32 %v243, %v246
    %v250 = vadd.f32 %v244, %v246
    %v251 = vmax.f32 %v247, 0.0
    %v252 = vmax.f32 %v248, 0.0
    %v253 = vmax.f32 %v249, 0.0
    %v254 = vmax.f32 %v250, 0.0
    %v255 = vld [vmem:[#allocation6] sm:$0xf]
    %v256 = vld [vmem:[#allocation6 + $0x4] sm:$0xf]
    %v257 = vld [vmem:[#allocation6 + $0x8] sm:$0xf]
    %v258 = vld [vmem:[#allocation6 + $0xc] sm:$0xf]
    %v259 = vld [vmem:[#allocation6 + $0x10] sm:$0xf]
    %v260 = vld [vmem:[#allocation6 + $0x14] sm:$0xf]
    %v261 = vld [vmem:[#allocation6 + $0x18] sm:$0xf]
    %v262 = vld [vmem:[#allocation6 + $0x1c] sm:$0xf]
    %v263 = vld [vmem:[#allocation6 + $0x20] sm:$0xf]
    %v264 = vld [vmem:[#allocation6 + $0x24] sm:$0xf]
    %v265 = vld [vmem:[#allocation6 + $0x28] sm:$0xf]
    %v266 = vld [vmem:[#allocation6 + $0x2c] sm:$0xf]
    %v267 = vld [vmem:[#allocation6 + $0x30] sm:$0xf]
    %v268 = vld [vmem:[#allocation6 + $0x34] sm:$0xf]
    %v269 = vld [vmem:[#allocation6 + $0x38] sm:$0xf]
    %v270 = vld [vmem:[#allocation6 + $0x3c] sm:$0xf]
    %v271 = vld [vmem:[#allocation7 + $0x3] sm:$0x1]
    %v272 = vpack.c.bf16 %v252, %v251
    %v273 = vpack.c.bf16 %v254, %v253
    %274 = vmatpush.bf16.msra.mxu0 0
    %275 = vmatpush.bf16.msra.mxu0 0
    %276 = vmatpush.bf16.msra.mxu0 0
    %277 = vmatpush.bf16.msra.mxu0 0
    %278 = vmatpush.bf16.msra.mxu0 0
    %279 = vmatpush.bf16.msra.mxu0 0
    %280 = vmatpush.bf16.msra.mxu0 %v273
    %281 = vmatpush.bf16.msra.mxu0 %v272
    %282 = vmatmul.bf16.gmra.mxu0 %v139
    %v283 = vpop.f32.mrf.mxu0
    %v284 = vadd.f32 0.0, %v283
    %v285 = vpop.f32.mrf.mxu0
    %v286 = vadd.f32 0.0, %v285
    %287 = vmatmul.bf16.gmra.mxu0 %v142
    %v288 = vpop.f32.mrf.mxu0
    %v289 = vadd.f32 0.0, %v288
    %v290 = vpop.f32.mrf.mxu0
    %v291 = vadd.f32 0.0, %v290
    %292 = vdwg.mxu0
    %v293 = vmul.f32 %v101, %v251
    %v294 = vmul.f32 %v106, %v252
    %v295 = vmul.f32 %v111, %v253
    %v296 = vmul.f32 %v116, %v254
    %v297 = vpack.c.bf16 %v294, %v293
    %v298 = vpack.c.bf16 %v296, %v295
    %v299 = vpack.c.bf16 %v286, %v284
    %v300 = vpack.c.bf16 %v291, %v289
    %v305 = vunpack.c.l.b16 %v259
    %v306 = vunpack.c.l.b16 %v260
    %v307 = vunpack.c.l.b16 %v261
    %v308 = vunpack.c.l.b16 %v262
    %v309 = vpack.c.b16 %v306, %v305
    %v310 = vpack.c.b16 %v308, %v307
    %v314 = vsel %vm137, %v299, 0
    %v317 = vsel %vm137, %v300, 0
    %319 = vmatpush.bf16.msra.mxu0 0
    %320 = vmatpush.bf16.msra.mxu0 0
    %321 = vmatpush.bf16.msra.mxu0 0
    %322 = vmatpush.bf16.msra.mxu0 0
    %323 = vmatpush.bf16.msra.mxu0 0
    %324 = vmatpush.bf16.msra.mxu0 0
    %325 = vmatpush.bf16.msra.mxu0 %v310
    %326 = vmatpush.bf16.msra.mxu0 %v309
    %327 = vmatmul.bf16.gmra.mxu0 %v314
    %v328 = vpop.f32.mrf.mxu0
    %v329 = vadd.f32 0.0, %v328
    %v330 = vpop.f32.mrf.mxu0
    %v331 = vadd.f32 0.0, %v330
    %332 = vmatmul.bf16.gmra.mxu0 %v317
    %v333 = vpop.f32.mrf.mxu0
    %v334 = vadd.f32 0.0, %v333
    %v335 = vpop.f32.mrf.mxu0
    %v336 = vadd.f32 0.0, %v335
    %337 = vdwg.mxu0
    %v342 = vunpack.c.l.b16 %v255
    %v343 = vunpack.c.l.b16 %v256
    %v344 = vunpack.c.l.b16 %v257
    %v345 = vunpack.c.l.b16 %v258
    %v346 = vpack.c.b16 %v343, %v342
    %v347 = vpack.c.b16 %v345, %v344
    %v351 = vsel %vm137, %v297, 0
    %v354 = vsel %vm137, %v298, 0
    %356 = vmatpush.bf16.msra.mxu0 0
    %357 = vmatpush.bf16.msra.mxu0 0
    %358 = vmatpush.bf16.msra.mxu0 0
    %359 = vmatpush.bf16.msra.mxu0 0
    %360 = vmatpush.bf16.msra.mxu0 0
    %361 = vmatpush.bf16.msra.mxu0 0
    %362 = vmatpush.bf16.msra.mxu0 %v347
    %363 = vmatpush.bf16.msra.mxu0 %v346
    %364 = vmatmul.bf16.gmra.mxu0 %v351
    %v365 = vpop.f32.mrf.mxu0
    %v366 = vadd.f32 %v329, %v365
    %v367 = vpop.f32.mrf.mxu0
    %v368 = vadd.f32 %v331, %v367
    %369 = vmatmul.bf16.gmra.mxu0 %v354
    %v370 = vpop.f32.mrf.mxu0
    %v371 = vadd.f32 %v334, %v370
    %v372 = vpop.f32.mrf.mxu0
    %v373 = vadd.f32 %v336, %v372
    %374 = vdwg.mxu0
    %v375 = vperm.slane %v271, 0
    %v376 = vadd.f32 %v366, %v375
    %v377 = vadd.f32 %v368, %v375
    %v378 = vadd.f32 %v371, %v375
    %v379 = vadd.f32 %v373, %v375
    %v380 = vld [vmem:[#allocation7 + $0x7] sm:$0x1]
    %v381 = vpack.c.bf16 %v377, %v376
    %v382 = vpack.c.bf16 %v379, %v378
    %383 = vmatpush.bf16.msra.mxu0 0
    %384 = vmatpush.bf16.msra.mxu0 0
    %385 = vmatpush.bf16.msra.mxu0 0
    %386 = vmatpush.bf16.msra.mxu0 0
    %387 = vmatpush.bf16.msra.mxu0 0
    %388 = vmatpush.bf16.msra.mxu0 0
    %389 = vmatpush.bf16.msra.mxu0 %v382
    %390 = vmatpush.bf16.msra.mxu0 %v381
    %391 = vmatmul.bf16.gmra.mxu0 %v139
    %v392 = vpop.f32.mrf.mxu0
    %v393 = vadd.f32 0.0, %v392
    %v394 = vpop.f32.mrf.mxu0
    %v395 = vadd.f32 0.0, %v394
    %396 = vmatmul.bf16.gmra.mxu0 %v142
    %v397 = vpop.f32.mrf.mxu0
    %v398 = vadd.f32 0.0, %v397
    %v399 = vpop.f32.mrf.mxu0
    %v400 = vadd.f32 0.0, %v399
    %401 = vdwg.mxu0
    %v402 = vmul.f32 %v101, %v376
    %v403 = vmul.f32 %v106, %v377
    %v404 = vmul.f32 %v111, %v378
    %v405 = vmul.f32 %v116, %v379
    %v406 = vpack.c.bf16 %v403, %v402
    %v407 = vpack.c.bf16 %v405, %v404
    %v408 = vpack.c.bf16 %v395, %v393
    %v409 = vpack.c.bf16 %v400, %v398
    %v414 = vunpack.c.l.b16 %v267
    %v415 = vunpack.c.l.b16 %v268
    %v416 = vunpack.c.l.b16 %v269
    %v417 = vunpack.c.l.b16 %v270
    %v418 = vpack.c.b16 %v415, %v414
    %v419 = vpack.c.b16 %v417, %v416
    %v423 = vsel %vm137, %v408, 0
    %v426 = vsel %vm137, %v409, 0
    %428 = vmatpush.bf16.msra.mxu0 0
    %429 = vmatpush.bf16.msra.mxu0 0
    %430 = vmatpush.bf16.msra.mxu0 0
    %431 = vmatpush.bf16.msra.mxu0 0
    %432 = vmatpush.bf16.msra.mxu0 0
    %433 = vmatpush.bf16.msra.mxu0 0
    %434 = vmatpush.bf16.msra.mxu0 %v419
    %435 = vmatpush.bf16.msra.mxu0 %v418
    %436 = vmatmul.bf16.gmra.mxu0 %v423
    %v437 = vpop.f32.mrf.mxu0
    %v438 = vadd.f32 0.0, %v437
    %v439 = vpop.f32.mrf.mxu0
    %v440 = vadd.f32 0.0, %v439
    %441 = vmatmul.bf16.gmra.mxu0 %v426
    %v442 = vpop.f32.mrf.mxu0
    %v443 = vadd.f32 0.0, %v442
    %v444 = vpop.f32.mrf.mxu0
    %v445 = vadd.f32 0.0, %v444
    %446 = vdwg.mxu0
    %v451 = vunpack.c.l.b16 %v263
    %v452 = vunpack.c.l.b16 %v264
    %v453 = vunpack.c.l.b16 %v265
    %v454 = vunpack.c.l.b16 %v266
    %v455 = vpack.c.b16 %v452, %v451
    %v456 = vpack.c.b16 %v454, %v453
    %v460 = vsel %vm137, %v406, 0
    %v463 = vsel %vm137, %v407, 0
    %465 = vmatpush.bf16.msra.mxu0 0
    %466 = vmatpush.bf16.msra.mxu0 0
    %467 = vmatpush.bf16.msra.mxu0 0
    %468 = vmatpush.bf16.msra.mxu0 0
    %469 = vmatpush.bf16.msra.mxu0 0
    %470 = vmatpush.bf16.msra.mxu0 0
    %471 = vmatpush.bf16.msra.mxu0 %v456
    %472 = vmatpush.bf16.msra.mxu0 %v455
    %473 = vmatmul.bf16.gmra.mxu0 %v460
    %v474 = vpop.f32.mrf.mxu0
    %v475 = vadd.f32 %v438, %v474
    %v476 = vpop.f32.mrf.mxu0
    %v477 = vadd.f32 %v440, %v476
    %478 = vmatmul.bf16.gmra.mxu0 %v463
    %v479 = vpop.f32.mrf.mxu0
    %v480 = vadd.f32 %v443, %v479
    %v481 = vpop.f32.mrf.mxu0
    %v482 = vadd.f32 %v445, %v481
    %483 = vdwg.mxu0
    %v484 = vperm.slane %v380, 0
    %v485 = vadd.f32 %v475, %v484
    %v486 = vadd.f32 %v477, %v484
    %v487 = vadd.f32 %v480, %v484
    %v488 = vadd.f32 %v482, %v484
    %v489 = vadd.f32 %v251, %v485
    %v490 = vadd.f32 %v252, %v486
    %v491 = vadd.f32 %v253, %v487
    %v492 = vadd.f32 %v254, %v488
    %s493 = scalar_lea.vmem [#allocation6], 64
    %v494 = vld [vmem:[%s493] sm:$0xf]
    %v495 = vld [vmem:[%s493 + $0x4] sm:$0xf]
    %v496 = vld [vmem:[%s493 + $0x8] sm:$0xf]
    %v497 = vld [vmem:[%s493 + $0xc] sm:$0xf]
    %v498 = vld [vmem:[%s493 + $0x10] sm:$0xf]
    %v499 = vld [vmem:[%s493 + $0x14] sm:$0xf]
    %v500 = vld [vmem:[%s493 + $0x18] sm:$0xf]
    %v501 = vld [vmem:[%s493 + $0x1c] sm:$0xf]
    %v502 = vld [vmem:[%s493 + $0x20] sm:$0xf]
    %v503 = vld [vmem:[%s493 + $0x24] sm:$0xf]
    %v504 = vld [vmem:[%s493 + $0x28] sm:$0xf]
    %v505 = vld [vmem:[%s493 + $0x2c] sm:$0xf]
    %v506 = vld [vmem:[%s493 + $0x30] sm:$0xf]
    %v507 = vld [vmem:[%s493 + $0x34] sm:$0xf]
    %v508 = vld [vmem:[%s493 + $0x38] sm:$0xf]
    %v509 = vld [vmem:[%s493 + $0x3c] sm:$0xf]
    %v510 = vld [vmem:[#allocation7 + $0x4] sm:$0x1]
    %v511 = vpack.c.bf16 %v490, %v489
    %v512 = vpack.c.bf16 %v492, %v491
    %513 = vmatpush.bf16.msra.mxu0 0
    %514 = vmatpush.bf16.msra.mxu0 0
    %515 = vmatpush.bf16.msra.mxu0 0
    %516 = vmatpush.bf16.msra.mxu0 0
    %517 = vmatpush.bf16.msra.mxu0 0
    %518 = vmatpush.bf16.msra.mxu0 0
    %519 = vmatpush.bf16.msra.mxu0 %v512
    %520 = vmatpush.bf16.msra.mxu0 %v511
    %521 = vmatmul.bf16.gmra.mxu0 %v139
    %v522 = vpop.f32.mrf.mxu0
    %v523 = vadd.f32 0.0, %v522
    %v524 = vpop.f32.mrf.mxu0
    %v525 = vadd.f32 0.0, %v524
    %526 = vmatmul.bf16.gmra.mxu0 %v142
    %v527 = vpop.f32.mrf.mxu0
    %v528 = vadd.f32 0.0, %v527
    %v529 = vpop.f32.mrf.mxu0
    %v530 = vadd.f32 0.0, %v529
    %531 = vdwg.mxu0
    %v532 = vmul.f32 %v101, %v489
    %v533 = vmul.f32 %v106, %v490
    %v534 = vmul.f32 %v111, %v491
    %v535 = vmul.f32 %v116, %v492
    %v536 = vpack.c.bf16 %v533, %v532
    %v537 = vpack.c.bf16 %v535, %v534
    %v538 = vpack.c.bf16 %v525, %v523
    %v539 = vpack.c.bf16 %v530, %v528
    %v544 = vunpack.c.l.b16 %v498
    %v545 = vunpack.c.l.b16 %v499
    %v546 = vunpack.c.l.b16 %v500
    %v547 = vunpack.c.l.b16 %v501
    %v548 = vpack.c.b16 %v545, %v544
    %v549 = vpack.c.b16 %v547, %v546
    %v553 = vsel %vm137, %v538, 0
    %v556 = vsel %vm137, %v539, 0
    %558 = vmatpush.bf16.msra.mxu0 0
    %559 = vmatpush.bf16.msra.mxu0 0
    %560 = vmatpush.bf16.msra.mxu0 0
    %561 = vmatpush.bf16.msra.mxu0 0
    %562 = vmatpush.bf16.msra.mxu0 0
    %563 = vmatpush.bf16.msra.mxu0 0
    %564 = vmatpush.bf16.msra.mxu0 %v549
    %565 = vmatpush.bf16.msra.mxu0 %v548
    %566 = vmatmul.bf16.gmra.mxu0 %v553
    %v567 = vpop.f32.mrf.mxu0
    %v568 = vadd.f32 0.0, %v567
    %v569 = vpop.f32.mrf.mxu0
    %v570 = vadd.f32 0.0, %v569
    %571 = vmatmul.bf16.gmra.mxu0 %v556
    %v572 = vpop.f32.mrf.mxu0
    %v573 = vadd.f32 0.0, %v572
    %v574 = vpop.f32.mrf.mxu0
    %v575 = vadd.f32 0.0, %v574
    %576 = vdwg.mxu0
    %v581 = vunpack.c.l.b16 %v494
    %v582 = vunpack.c.l.b16 %v495
    %v583 = vunpack.c.l.b16 %v496
    %v584 = vunpack.c.l.b16 %v497
    %v585 = vpack.c.b16 %v582, %v581
    %v586 = vpack.c.b16 %v584, %v583
    %v590 = vsel %vm137, %v536, 0
    %v593 = vsel %vm137, %v537, 0
    %595 = vmatpush.bf16.msra.mxu0 0
    %596 = vmatpush.bf16.msra.mxu0 0
    %597 = vmatpush.bf16.msra.mxu0 0
    %598 = vmatpush.bf16.msra.mxu0 0
    %599 = vmatpush.bf16.msra.mxu0 0
    %600 = vmatpush.bf16.msra.mxu0 0
    %601 = vmatpush.bf16.msra.mxu0 %v586
    %602 = vmatpush.bf16.msra.mxu0 %v585
    %603 = vmatmul.bf16.gmra.mxu0 %v590
    %v604 = vpop.f32.mrf.mxu0
    %v605 = vadd.f32 %v568, %v604
    %v606 = vpop.f32.mrf.mxu0
    %v607 = vadd.f32 %v570, %v606
    %608 = vmatmul.bf16.gmra.mxu0 %v593
    %v609 = vpop.f32.mrf.mxu0
    %v610 = vadd.f32 %v573, %v609
    %v611 = vpop.f32.mrf.mxu0
    %v612 = vadd.f32 %v575, %v611
    %613 = vdwg.mxu0
    %v614 = vperm.slane %v510, 0
    %v615 = vadd.f32 %v605, %v614
    %v616 = vadd.f32 %v607, %v614
    %v617 = vadd.f32 %v610, %v614
    %v618 = vadd.f32 %v612, %v614
    %v619 = vld [vmem:[#allocation7 + $0x8] sm:$0x1]
    %v620 = vpack.c.bf16 %v616, %v615
    %v621 = vpack.c.bf16 %v618, %v617
    %622 = vmatpush.bf16.msra.mxu0 0
    %623 = vmatpush.bf16.msra.mxu0 0
    %624 = vmatpush.bf16.msra.mxu0 0
    %625 = vmatpush.bf16.msra.mxu0 0
    %626 = vmatpush.bf16.msra.mxu0 0
    %627 = vmatpush.bf16.msra.mxu0 0
    %628 = vmatpush.bf16.msra.mxu0 %v621
    %629 = vmatpush.bf16.msra.mxu0 %v620
    %630 = vmatmul.bf16.gmra.mxu0 %v139
    %v631 = vpop.f32.mrf.mxu0
    %v632 = vadd.f32 0.0, %v631
    %v633 = vpop.f32.mrf.mxu0
    %v634 = vadd.f32 0.0, %v633
    %635 = vmatmul.bf16.gmra.mxu0 %v142
    %v636 = vpop.f32.mrf.mxu0
    %v637 = vadd.f32 0.0, %v636
    %v638 = vpop.f32.mrf.mxu0
    %v639 = vadd.f32 0.0, %v638
    %640 = vdwg.mxu0
    %v641 = vmul.f32 %v101, %v615
    %v642 = vmul.f32 %v106, %v616
    %v643 = vmul.f32 %v111, %v617
    %v644 = vmul.f32 %v116, %v618
    %v645 = vpack.c.bf16 %v642, %v641
    %v646 = vpack.c.bf16 %v644, %v643
    %v647 = vpack.c.bf16 %v634, %v632
    %v648 = vpack.c.bf16 %v639, %v637
    %v653 = vunpack.c.l.b16 %v506
    %v654 = vunpack.c.l.b16 %v507
    %v655 = vunpack.c.l.b16 %v508
    %v656 = vunpack.c.l.b16 %v509
    %v657 = vpack.c.b16 %v654, %v653
    %v658 = vpack.c.b16 %v656, %v655
    %v662 = vsel %vm137, %v647, 0
    %v665 = vsel %vm137, %v648, 0
    %667 = vmatpush.bf16.msra.mxu0 0
    %668 = vmatpush.bf16.msra.mxu0 0
    %669 = vmatpush.bf16.msra.mxu0 0
    %670 = vmatpush.bf16.msra.mxu0 0
    %671 = vmatpush.bf16.msra.mxu0 0
    %672 = vmatpush.bf16.msra.mxu0 0
    %673 = vmatpush.bf16.msra.mxu0 %v658
    %674 = vmatpush.bf16.msra.mxu0 %v657
    %675 = vmatmul.bf16.gmra.mxu0 %v662
    %v676 = vpop.f32.mrf.mxu0
    %v677 = vadd.f32 0.0, %v676
    %v678 = vpop.f32.mrf.mxu0
    %v679 = vadd.f32 0.0, %v678
    %680 = vmatmul.bf16.gmra.mxu0 %v665
    %v681 = vpop.f32.mrf.mxu0
    %v682 = vadd.f32 0.0, %v681
    %v683 = vpop.f32.mrf.mxu0
    %v684 = vadd.f32 0.0, %v683
    %685 = vdwg.mxu0
    %v690 = vunpack.c.l.b16 %v502
    %v691 = vunpack.c.l.b16 %v503
    %v692 = vunpack.c.l.b16 %v504
    %v693 = vunpack.c.l.b16 %v505
    %v694 = vpack.c.b16 %v691, %v690
    %v695 = vpack.c.b16 %v693, %v692
    %v699 = vsel %vm137, %v645, 0
    %v702 = vsel %vm137, %v646, 0
    %704 = vmatpush.bf16.msra.mxu0 0
    %705 = vmatpush.bf16.msra.mxu0 0
    %706 = vmatpush.bf16.msra.mxu0 0
    %707 = vmatpush.bf16.msra.mxu0 0
    %708 = vmatpush.bf16.msra.mxu0 0
    %709 = vmatpush.bf16.msra.mxu0 0
    %710 = vmatpush.bf16.msra.mxu0 %v695
    %711 = vmatpush.bf16.msra.mxu0 %v694
    %712 = vmatmul.bf16.gmra.mxu0 %v699
    %v713 = vpop.f32.mrf.mxu0
    %v714 = vadd.f32 %v677, %v713
    %v715 = vpop.f32.mrf.mxu0
    %v716 = vadd.f32 %v679, %v715
    %717 = vmatmul.bf16.gmra.mxu0 %v702
    %v718 = vpop.f32.mrf.mxu0
    %v719 = vadd.f32 %v682, %v718
    %v720 = vpop.f32.mrf.mxu0
    %v721 = vadd.f32 %v684, %v720
    %722 = vdwg.mxu0
    %v723 = vperm.slane %v619, 0
    %v724 = vadd.f32 %v714, %v723
    %v725 = vadd.f32 %v716, %v723
    %v726 = vadd.f32 %v719, %v723
    %v727 = vadd.f32 %v721, %v723
    %v728 = vadd.f32 %v489, %v724
    %v729 = vadd.f32 %v490, %v725
    %v730 = vadd.f32 %v491, %v726
    %v731 = vadd.f32 %v492, %v727
    %s732 = scalar_lea.vmem [#allocation6], 128
    %v733 = vld [vmem:[%s732] sm:$0xf]
    %v734 = vld [vmem:[%s732 + $0x4] sm:$0xf]
    %v735 = vld [vmem:[%s732 + $0x8] sm:$0xf]
    %v736 = vld [vmem:[%s732 + $0xc] sm:$0xf]
    %v737 = vld [vmem:[%s732 + $0x10] sm:$0xf]
    %v738 = vld [vmem:[%s732 + $0x14] sm:$0xf]
    %v739 = vld [vmem:[%s732 + $0x18] sm:$0xf]
    %v740 = vld [vmem:[%s732 + $0x1c] sm:$0xf]
    %v741 = vld [vmem:[%s732 + $0x20] sm:$0xf]
    %v742 = vld [vmem:[%s732 + $0x24] sm:$0xf]
    %v743 = vld [vmem:[%s732 + $0x28] sm:$0xf]
    %v744 = vld [vmem:[%s732 + $0x2c] sm:$0xf]
    %v745 = vld [vmem:[%s732 + $0x30] sm:$0xf]
    %v746 = vld [vmem:[%s732 + $0x34] sm:$0xf]
    %v747 = vld [vmem:[%s732 + $0x38] sm:$0xf]
    %v748 = vld [vmem:[%s732 + $0x3c] sm:$0xf]
    %v749 = vld [vmem:[#allocation7 + $0x5] sm:$0x1]
    %v750 = vpack.c.bf16 %v729, %v728
    %v751 = vpack.c.bf16 %v731, %v730
    %752 = vmatpush.bf16.msra.mxu0 0
    %753 = vmatpush.bf16.msra.mxu0 0
    %754 = vmatpush.bf16.msra.mxu0 0
    %755 = vmatpush.bf16.msra.mxu0 0
    %756 = vmatpush.bf16.msra.mxu0 0
    %757 = vmatpush.bf16.msra.mxu0 0
    %758 = vmatpush.bf16.msra.mxu0 %v751
    %759 = vmatpush.bf16.msra.mxu0 %v750
    %760 = vmatmul.bf16.gmra.mxu0 %v139
    %v761 = vpop.f32.mrf.mxu0
    %v762 = vadd.f32 0.0, %v761
    %v763 = vpop.f32.mrf.mxu0
    %v764 = vadd.f32 0.0, %v763
    %765 = vmatmul.bf16.gmra.mxu0 %v142
    %v766 = vpop.f32.mrf.mxu0
    %v767 = vadd.f32 0.0, %v766
    %v768 = vpop.f32.mrf.mxu0
    %v769 = vadd.f32 0.0, %v768
    %770 = vdwg.mxu0
    %v771 = vmul.f32 %v101, %v728
    %v772 = vmul.f32 %v106, %v729
    %v773 = vmul.f32 %v111, %v730
    %v774 = vmul.f32 %v116, %v731
    %v775 = vpack.c.bf16 %v772, %v771
    %v776 = vpack.c.bf16 %v774, %v773
    %v777 = vpack.c.bf16 %v764, %v762
    %v778 = vpack.c.bf16 %v769, %v767
    %v783 = vunpack.c.l.b16 %v737
    %v784 = vunpack.c.l.b16 %v738
    %v785 = vunpack.c.l.b16 %v739
    %v786 = vunpack.c.l.b16 %v740
    %v787 = vpack.c.b16 %v784, %v783
    %v788 = vpack.c.b16 %v786, %v785
    %v792 = vsel %vm137, %v777, 0
    %v795 = vsel %vm137, %v778, 0
    %797 = vmatpush.bf16.msra.mxu0 0
    %798 = vmatpush.bf16.msra.mxu0 0
    %799 = vmatpush.bf16.msra.mxu0 0
    %800 = vmatpush.bf16.msra.mxu0 0
    %801 = vmatpush.bf16.msra.mxu0 0
    %802 = vmatpush.bf16.msra.mxu0 0
    %803 = vmatpush.bf16.msra.mxu0 %v788
    %804 = vmatpush.bf16.msra.mxu0 %v787
    %805 = vmatmul.bf16.gmra.mxu0 %v792
    %v806 = vpop.f32.mrf.mxu0
    %v807 = vadd.f32 0.0, %v806
    %v808 = vpop.f32.mrf.mxu0
    %v809 = vadd.f32 0.0, %v808
    %810 = vmatmul.bf16.gmra.mxu0 %v795
    %v811 = vpop.f32.mrf.mxu0
    %v812 = vadd.f32 0.0, %v811
    %v813 = vpop.f32.mrf.mxu0
    %v814 = vadd.f32 0.0, %v813
    %815 = vdwg.mxu0
    %v820 = vunpack.c.l.b16 %v733
    %v821 = vunpack.c.l.b16 %v734
    %v822 = vunpack.c.l.b16 %v735
    %v823 = vunpack.c.l.b16 %v736
    %v824 = vpack.c.b16 %v821, %v820
    %v825 = vpack.c.b16 %v823, %v822
    %v829 = vsel %vm137, %v775, 0
    %v832 = vsel %vm137, %v776, 0
    %834 = vmatpush.bf16.msra.mxu0 0
    %835 = vmatpush.bf16.msra.mxu0 0
    %836 = vmatpush.bf16.msra.mxu0 0
    %837 = vmatpush.bf16.msra.mxu0 0
    %838 = vmatpush.bf16.msra.mxu0 0
    %839 = vmatpush.bf16.msra.mxu0 0
    %840 = vmatpush.bf16.msra.mxu0 %v825
    %841 = vmatpush.bf16.msra.mxu0 %v824
    %842 = vmatmul.bf16.gmra.mxu0 %v829
    %v843 = vpop.f32.mrf.mxu0
    %v844 = vadd.f32 %v807, %v843
    %v845 = vpop.f32.mrf.mxu0
    %v846 = vadd.f32 %v809, %v845
    %847 = vmatmul.bf16.gmra.mxu0 %v832
    %v848 = vpop.f32.mrf.mxu0
    %v849 = vadd.f32 %v812, %v848
    %v850 = vpop.f32.mrf.mxu0
    %v851 = vadd.f32 %v814, %v850
    %852 = vdwg.mxu0
    %v853 = vperm.slane %v749, 0
    %v854 = vadd.f32 %v844, %v853
    %v855 = vadd.f32 %v846, %v853
    %v856 = vadd.f32 %v849, %v853
    %v857 = vadd.f32 %v851, %v853
    %v858 = vld [vmem:[#allocation7 + $0x9] sm:$0x1]
    %v859 = vpack.c.bf16 %v855, %v854
    %v860 = vpack.c.bf16 %v857, %v856
    %861 = vmatpush.bf16.msra.mxu0 0
    %862 = vmatpush.bf16.msra.mxu0 0
    %863 = vmatpush.bf16.msra.mxu0 0
    %864 = vmatpush.bf16.msra.mxu0 0
    %865 = vmatpush.bf16.msra.mxu0 0
    %866 = vmatpush.bf16.msra.mxu0 0
    %867 = vmatpush.bf16.msra.mxu0 %v860
    %868 = vmatpush.bf16.msra.mxu0 %v859
    %869 = vmatmul.bf16.gmra.mxu0 %v139
    %v870 = vpop.f32.mrf.mxu0
    %v871 = vadd.f32 0.0, %v870
    %v872 = vpop.f32.mrf.mxu0
    %v873 = vadd.f32 0.0, %v872
    %874 = vmatmul.bf16.gmra.mxu0 %v142
    %v875 = vpop.f32.mrf.mxu0
    %v876 = vadd.f32 0.0, %v875
    %v877 = vpop.f32.mrf.mxu0
    %v878 = vadd.f32 0.0, %v877
    %879 = vdwg.mxu0
    %v880 = vmul.f32 %v101, %v854
    %v881 = vmul.f32 %v106, %v855
    %v882 = vmul.f32 %v111, %v856
    %v883 = vmul.f32 %v116, %v857
    %v884 = vpack.c.bf16 %v881, %v880
    %v885 = vpack.c.bf16 %v883, %v882
    %v886 = vpack.c.bf16 %v873, %v871
    %v887 = vpack.c.bf16 %v878, %v876
    %v892 = vunpack.c.l.b16 %v745
    %v893 = vunpack.c.l.b16 %v746
    %v894 = vunpack.c.l.b16 %v747
    %v895 = vunpack.c.l.b16 %v748
    %v896 = vpack.c.b16 %v893, %v892
    %v897 = vpack.c.b16 %v895, %v894
    %v901 = vsel %vm137, %v886, 0
    %v904 = vsel %vm137, %v887, 0
    %906 = vmatpush.bf16.msra.mxu0 0
    %907 = vmatpush.bf16.msra.mxu0 0
    %908 = vmatpush.bf16.msra.mxu0 0
    %909 = vmatpush.bf16.msra.mxu0 0
    %910 = vmatpush.bf16.msra.mxu0 0
    %911 = vmatpush.bf16.msra.mxu0 0
    %912 = vmatpush.bf16.msra.mxu0 %v897
    %913 = vmatpush.bf16.msra.mxu0 %v896
    %914 = vmatmul.bf16.gmra.mxu0 %v901
    %v915 = vpop.f32.mrf.mxu0
    %v916 = vadd.f32 0.0, %v915
    %v917 = vpop.f32.mrf.mxu0
    %v918 = vadd.f32 0.0, %v917
    %919 = vmatmul.bf16.gmra.mxu0 %v904
    %v920 = vpop.f32.mrf.mxu0
    %v921 = vadd.f32 0.0, %v920
    %v922 = vpop.f32.mrf.mxu0
    %v923 = vadd.f32 0.0, %v922
    %924 = vdwg.mxu0
    %v929 = vunpack.c.l.b16 %v741
    %v930 = vunpack.c.l.b16 %v742
    %v931 = vunpack.c.l.b16 %v743
    %v932 = vunpack.c.l.b16 %v744
    %v933 = vpack.c.b16 %v930, %v929
    %v934 = vpack.c.b16 %v932, %v931
    %v938 = vsel %vm137, %v884, 0
    %v941 = vsel %vm137, %v885, 0
    %943 = vmatpush.bf16.msra.mxu0 0
    %944 = vmatpush.bf16.msra.mxu0 0
    %945 = vmatpush.bf16.msra.mxu0 0
    %946 = vmatpush.bf16.msra.mxu0 0
    %947 = vmatpush.bf16.msra.mxu0 0
    %948 = vmatpush.bf16.msra.mxu0 0
    %949 = vmatpush.bf16.msra.mxu0 %v934
    %950 = vmatpush.bf16.msra.mxu0 %v933
    %951 = vmatmul.bf16.gmra.mxu0 %v938
    %v952 = vpop.f32.mrf.mxu0
    %v953 = vadd.f32 %v916, %v952
    %v954 = vpop.f32.mrf.mxu0
    %v955 = vadd.f32 %v918, %v954
    %956 = vmatmul.bf16.gmra.mxu0 %v941
    %v957 = vpop.f32.mrf.mxu0
    %v958 = vadd.f32 %v921, %v957
    %v959 = vpop.f32.mrf.mxu0
    %v960 = vadd.f32 %v923, %v959
    %961 = vdwg.mxu0
    %v962 = vperm.slane %v858, 0
    %v963 = vadd.f32 %v953, %v962
    %v964 = vadd.f32 %v955, %v962
    %v965 = vadd.f32 %v958, %v962
    %v966 = vadd.f32 %v960, %v962
    %v967 = vadd.f32 %v728, %v963
    %v968 = vadd.f32 %v729, %v964
    %v969 = vadd.f32 %v730, %v965
    %v970 = vadd.f32 %v731, %v966
    %s971 = scalar_lea.vmem [#allocation6], 192
    %v972 = vld [vmem:[%s971] sm:$0xf]
    %v973 = vld [vmem:[%s971 + $0x4] sm:$0xf]
    %v974 = vld [vmem:[%s971 + $0x8] sm:$0xf]
    %v975 = vld [vmem:[%s971 + $0xc] sm:$0xf]
    %v976 = vld [vmem:[%s971 + $0x10] sm:$0xf]
    %v977 = vld [vmem:[%s971 + $0x14] sm:$0xf]
    %v978 = vld [vmem:[%s971 + $0x18] sm:$0xf]
    %v979 = vld [vmem:[%s971 + $0x1c] sm:$0xf]
    %v980 = vld [vmem:[%s971 + $0x20] sm:$0xf]
    %v981 = vld [vmem:[%s971 + $0x24] sm:$0xf]
    %v982 = vld [vmem:[%s971 + $0x28] sm:$0xf]
    %v983 = vld [vmem:[%s971 + $0x2c] sm:$0xf]
    %v984 = vld [vmem:[%s971 + $0x30] sm:$0xf]
    %v985 = vld [vmem:[%s971 + $0x34] sm:$0xf]
    %v986 = vld [vmem:[%s971 + $0x38] sm:$0xf]
    %v987 = vld [vmem:[%s971 + $0x3c] sm:$0xf]
    %v988 = vld [vmem:[#allocation7 + $0x6] sm:$0x1]
    %v989 = vpack.c.bf16 %v968, %v967
    %v990 = vpack.c.bf16 %v970, %v969
    %991 = vmatpush.bf16.msra.mxu0 0
    %992 = vmatpush.bf16.msra.mxu0 0
    %993 = vmatpush.bf16.msra.mxu0 0
    %994 = vmatpush.bf16.msra.mxu0 0
    %995 = vmatpush.bf16.msra.mxu0 0
    %996 = vmatpush.bf16.msra.mxu0 0
    %997 = vmatpush.bf16.msra.mxu0 %v990
    %998 = vmatpush.bf16.msra.mxu0 %v989
    %999 = vmatmul.bf16.gmra.mxu0 %v139
    %v1000 = vpop.f32.mrf.mxu0
    %v1001 = vadd.f32 0.0, %v1000
    %v1002 = vpop.f32.mrf.mxu0
    %v1003 = vadd.f32 0.0, %v1002
    %1004 = vmatmul.bf16.gmra.mxu0 %v142
    %v1005 = vpop.f32.mrf.mxu0
    %v1006 = vadd.f32 0.0, %v1005
    %v1007 = vpop.f32.mrf.mxu0
    %v1008 = vadd.f32 0.0, %v1007
    %1009 = vdwg.mxu0
    %v1010 = vmul.f32 %v101, %v967
    %v1011 = vmul.f32 %v106, %v968
    %v1012 = vmul.f32 %v111, %v969
    %v1013 = vmul.f32 %v116, %v970
    %v1014 = vpack.c.bf16 %v1011, %v1010
    %v1015 = vpack.c.bf16 %v1013, %v1012
    %v1016 = vpack.c.bf16 %v1003, %v1001
    %v1017 = vpack.c.bf16 %v1008, %v1006
    %v1022 = vunpack.c.l.b16 %v976
    %v1023 = vunpack.c.l.b16 %v977
    %v1024 = vunpack.c.l.b16 %v978
    %v1025 = vunpack.c.l.b16 %v979
    %v1026 = vpack.c.b16 %v1023, %v1022
    %v1027 = vpack.c.b16 %v1025, %v1024
    %v1031 = vsel %vm137, %v1016, 0
    %v1034 = vsel %vm137, %v1017, 0
    %1036 = vmatpush.bf16.msra.mxu0 0
    %1037 = vmatpush.bf16.msra.mxu0 0
    %1038 = vmatpush.bf16.msra.mxu0 0
    %1039 = vmatpush.bf16.msra.mxu0 0
    %1040 = vmatpush.bf16.msra.mxu0 0
    %1041 = vmatpush.bf16.msra.mxu0 0
    %1042 = vmatpush.bf16.msra.mxu0 %v1027
    %1043 = vmatpush.bf16.msra.mxu0 %v1026
    %1044 = vmatmul.bf16.gmra.mxu0 %v1031
    %v1045 = vpop.f32.mrf.mxu0
    %v1046 = vadd.f32 0.0, %v1045
    %v1047 = vpop.f32.mrf.mxu0
    %v1048 = vadd.f32 0.0, %v1047
    %1049 = vmatmul.bf16.gmra.mxu0 %v1034
    %v1050 = vpop.f32.mrf.mxu0
    %v1051 = vadd.f32 0.0, %v1050
    %v1052 = vpop.f32.mrf.mxu0
    %v1053 = vadd.f32 0.0, %v1052
    %1054 = vdwg.mxu0
    %v1059 = vunpack.c.l.b16 %v972
    %v1060 = vunpack.c.l.b16 %v973
    %v1061 = vunpack.c.l.b16 %v974
    %v1062 = vunpack.c.l.b16 %v975
    %v1063 = vpack.c.b16 %v1060, %v1059
    %v1064 = vpack.c.b16 %v1062, %v1061
    %v1068 = vsel %vm137, %v1014, 0
    %v1071 = vsel %vm137, %v1015, 0
    %1073 = vmatpush.bf16.msra.mxu0 0
    %1074 = vmatpush.bf16.msra.mxu0 0
    %1075 = vmatpush.bf16.msra.mxu0 0
    %1076 = vmatpush.bf16.msra.mxu0 0
    %1077 = vmatpush.bf16.msra.mxu0 0
    %1078 = vmatpush.bf16.msra.mxu0 0
    %1079 = vmatpush.bf16.msra.mxu0 %v1064
    %1080 = vmatpush.bf16.msra.mxu0 %v1063
    %1081 = vmatmul.bf16.gmra.mxu0 %v1068
    %v1082 = vpop.f32.mrf.mxu0
    %v1083 = vadd.f32 %v1046, %v1082
    %v1084 = vpop.f32.mrf.mxu0
    %v1085 = vadd.f32 %v1048, %v1084
    %1086 = vmatmul.bf16.gmra.mxu0 %v1071
    %v1087 = vpop.f32.mrf.mxu0
    %v1088 = vadd.f32 %v1051, %v1087
    %v1089 = vpop.f32.mrf.mxu0
    %v1090 = vadd.f32 %v1053, %v1089
    %1091 = vdwg.mxu0
    %v1092 = vperm.slane %v988, 0
    %v1093 = vadd.f32 %v1083, %v1092
    %v1094 = vadd.f32 %v1085, %v1092
    %v1095 = vadd.f32 %v1088, %v1092
    %v1096 = vadd.f32 %v1090, %v1092
    %v1097 = vld [vmem:[#allocation7 + $0xa] sm:$0x1]
    %v1098 = vpack.c.bf16 %v1094, %v1093
    %v1099 = vpack.c.bf16 %v1096, %v1095
    %1100 = vmatpush.bf16.msra.mxu0 0
    %1101 = vmatpush.bf16.msra.mxu0 0
    %1102 = vmatpush.bf16.msra.mxu0 0
    %1103 = vmatpush.bf16.msra.mxu0 0
    %1104 = vmatpush.bf16.msra.mxu0 0
    %1105 = vmatpush.bf16.msra.mxu0 0
    %1106 = vmatpush.bf16.msra.mxu0 %v1099
    %1107 = vmatpush.bf16.msra.mxu0 %v1098
    %1108 = vmatmul.bf16.gmra.mxu0 %v139
    %v1109 = vpop.f32.mrf.mxu0
    %v1110 = vadd.f32 0.0, %v1109
    %v1111 = vpop.f32.mrf.mxu0
    %v1112 = vadd.f32 0.0, %v1111
    %1113 = vmatmul.bf16.gmra.mxu0 %v142
    %v1114 = vpop.f32.mrf.mxu0
    %v1115 = vadd.f32 0.0, %v1114
    %v1116 = vpop.f32.mrf.mxu0
    %v1117 = vadd.f32 0.0, %v1116
    %1118 = vdwg.mxu0
    %v1119 = vmul.f32 %v101, %v1093
    %v1120 = vmul.f32 %v106, %v1094
    %v1121 = vmul.f32 %v111, %v1095
    %v1122 = vmul.f32 %v116, %v1096
    %v1123 = vpack.c.bf16 %v1120, %v1119
    %v1124 = vpack.c.bf16 %v1122, %v1121
    %v1125 = vpack.c.bf16 %v1112, %v1110
    %v1126 = vpack.c.bf16 %v1117, %v1115
    %v1131 = vunpack.c.l.b16 %v984
    %v1132 = vunpack.c.l.b16 %v985
    %v1133 = vunpack.c.l.b16 %v986
    %v1134 = vunpack.c.l.b16 %v987
    %v1135 = vpack.c.b16 %v1132, %v1131
    %v1136 = vpack.c.b16 %v1134, %v1133
    %v1140 = vsel %vm137, %v1125, 0
    %v1143 = vsel %vm137, %v1126, 0
    %1145 = vmatpush.bf16.msra.mxu0 0
    %1146 = vmatpush.bf16.msra.mxu0 0
    %1147 = vmatpush.bf16.msra.mxu0 0
    %1148 = vmatpush.bf16.msra.mxu0 0
    %1149 = vmatpush.bf16.msra.mxu0 0
    %1150 = vmatpush.bf16.msra.mxu0 0
    %1151 = vmatpush.bf16.msra.mxu0 %v1136
    %1152 = vmatpush.bf16.msra.mxu0 %v1135
    %1153 = vmatmul.bf16.gmra.mxu0 %v1140
    %v1154 = vpop.f32.mrf.mxu0
    %v1155 = vadd.f32 0.0, %v1154
    %v1156 = vpop.f32.mrf.mxu0
    %v1157 = vadd.f32 0.0, %v1156
    %1158 = vmatmul.bf16.gmra.mxu0 %v1143
    %v1159 = vpop.f32.mrf.mxu0
    %v1160 = vadd.f32 0.0, %v1159
    %v1161 = vpop.f32.mrf.mxu0
    %v1162 = vadd.f32 0.0, %v1161
    %1163 = vdwg.mxu0
    %v1168 = vunpack.c.l.b16 %v980
    %v1169 = vunpack.c.l.b16 %v981
    %v1170 = vunpack.c.l.b16 %v982
    %v1171 = vunpack.c.l.b16 %v983
    %v1172 = vpack.c.b16 %v1169, %v1168
    %v1173 = vpack.c.b16 %v1171, %v1170
    %v1177 = vsel %vm137, %v1123, 0
    %v1180 = vsel %vm137, %v1124, 0
    %1182 = vmatpush.bf16.msra.mxu0 0
    %1183 = vmatpush.bf16.msra.mxu0 0
    %1184 = vmatpush.bf16.msra.mxu0 0
    %1185 = vmatpush.bf16.msra.mxu0 0
    %1186 = vmatpush.bf16.msra.mxu0 0
    %1187 = vmatpush.bf16.msra.mxu0 0
    %1188 = vmatpush.bf16.msra.mxu0 %v1173
    %1189 = vmatpush.bf16.msra.mxu0 %v1172
    %1190 = vmatmul.bf16.gmra.mxu0 %v1177
    %v1191 = vpop.f32.mrf.mxu0
    %v1192 = vadd.f32 %v1155, %v1191
    %v1193 = vpop.f32.mrf.mxu0
    %v1194 = vadd.f32 %v1157, %v1193
    %1195 = vmatmul.bf16.gmra.mxu0 %v1180
    %v1196 = vpop.f32.mrf.mxu0
    %v1197 = vadd.f32 %v1160, %v1196
    %v1198 = vpop.f32.mrf.mxu0
    %v1199 = vadd.f32 %v1162, %v1198
    %1200 = vdwg.mxu0
    %v1201 = vperm.slane %v1097, 0
    %v1202 = vadd.f32 %v1192, %v1201
    %v1203 = vadd.f32 %v1194, %v1201
    %v1204 = vadd.f32 %v1197, %v1201
    %v1205 = vadd.f32 %v1199, %v1201
    %v1206 = vadd.f32 %v967, %v1202
    %v1207 = vadd.f32 %v968, %v1203
    %v1208 = vadd.f32 %v969, %v1204
    %v1209 = vadd.f32 %v970, %v1205
    %v1210 = vld [vmem:[#allocation7 + $0xb] sm:$0x1]
    %v1211 = vld [vmem:[%s5] sm:$0xf]
    %v1212 = vld [vmem:[%s5 + $0x4] sm:$0xf]
    %v1213 = vld [vmem:[%s5 + $0x8] sm:$0xf]
    %v1214 = vld [vmem:[%s5 + $0xc] sm:$0xf]
    %v1215 = vld [vmem:[%s5 + $0x10] sm:$0xf]
    %v1216 = vld [vmem:[%s5 + $0x14] sm:$0xf]
    %v1217 = vld [vmem:[%s5 + $0x18] sm:$0xf]
    %v1218 = vld [vmem:[%s5 + $0x1c] sm:$0xf]
    %v1219 = vpack.c.bf16 %v1207, %v1206
    %v1220 = vpack.c.bf16 %v1209, %v1208
    %1221 = vmatpush.bf16.msra.mxu0 0
    %1222 = vmatpush.bf16.msra.mxu0 0
    %1223 = vmatpush.bf16.msra.mxu0 0
    %1224 = vmatpush.bf16.msra.mxu0 0
    %1225 = vmatpush.bf16.msra.mxu0 0
    %1226 = vmatpush.bf16.msra.mxu0 0
    %1227 = vmatpush.bf16.msra.mxu0 %v1220
    %1228 = vmatpush.bf16.msra.mxu0 %v1219
    %1229 = vmatmul.bf16.gmra.mxu0 %v139
    %v1230 = vpop.f32.mrf.mxu0
    %v1231 = vadd.f32 0.0, %v1230
    %v1232 = vpop.f32.mrf.mxu0
    %v1233 = vadd.f32 0.0, %v1232
    %1234 = vmatmul.bf16.gmra.mxu0 %v142
    %v1235 = vpop.f32.mrf.mxu0
    %v1236 = vadd.f32 0.0, %v1235
    %v1237 = vpop.f32.mrf.mxu0
    %v1238 = vadd.f32 0.0, %v1237
    %1239 = vdwg.mxu0
    %v1240 = vmul.f32 %v101, %v1206
    %v1241 = vmul.f32 %v106, %v1207
    %v1242 = vmul.f32 %v111, %v1208
    %v1243 = vmul.f32 %v116, %v1209
    %v1244 = vpack.c.bf16 %v1241, %v1240
    %v1245 = vpack.c.bf16 %v1243, %v1242
    %v1246 = vpack.c.bf16 %v1233, %v1231
    %v1247 = vpack.c.bf16 %v1238, %v1236
    %v1252 = vunpack.c.l.b16 %v1215
    %v1253 = vunpack.c.l.b16 %v1216
    %v1254 = vunpack.c.l.b16 %v1217
    %v1255 = vunpack.c.l.b16 %v1218
    %v1256 = vpack.c.b16 %v1253, %v1252
    %v1257 = vpack.c.b16 %v1255, %v1254
    %v1261 = vsel %vm137, %v1246, 0
    %v1264 = vsel %vm137, %v1247, 0
    %1266 = vmatpush.bf16.msra.mxu0 0
    %1267 = vmatpush.bf16.msra.mxu0 0
    %1268 = vmatpush.bf16.msra.mxu0 0
    %1269 = vmatpush.bf16.msra.mxu0 0
    %1270 = vmatpush.bf16.msra.mxu0 0
    %1271 = vmatpush.bf16.msra.mxu0 0
    %1272 = vmatpush.bf16.msra.mxu0 %v1257
    %1273 = vmatpush.bf16.msra.mxu0 %v1256
    %1274 = vmatmul.bf16.gmra.mxu0 %v1261
    %v1275 = vpop.f32.mrf.mxu0
    %v1276 = vadd.f32 0.0, %v1275
    %v1277 = vpop.f32.mrf.mxu0
    %v1278 = vadd.f32 0.0, %v1277
    %1279 = vmatmul.bf16.gmra.mxu0 %v1264
    %v1280 = vpop.f32.mrf.mxu0
    %v1281 = vadd.f32 0.0, %v1280
    %v1282 = vpop.f32.mrf.mxu0
    %v1283 = vadd.f32 0.0, %v1282
    %1284 = vdwg.mxu0
    %v1289 = vunpack.c.l.b16 %v1211
    %v1290 = vunpack.c.l.b16 %v1212
    %v1291 = vunpack.c.l.b16 %v1213
    %v1292 = vunpack.c.l.b16 %v1214
    %v1293 = vpack.c.b16 %v1290, %v1289
    %v1294 = vpack.c.b16 %v1292, %v1291
    %v1298 = vsel %vm137, %v1244, 0
    %v1301 = vsel %vm137, %v1245, 0
    %1303 = vmatpush.bf16.msra.mxu0 0
    %1304 = vmatpush.bf16.msra.mxu0 0
    %1305 = vmatpush.bf16.msra.mxu0 0
    %1306 = vmatpush.bf16.msra.mxu0 0
    %1307 = vmatpush.bf16.msra.mxu0 0
    %1308 = vmatpush.bf16.msra.mxu0 0
    %1309 = vmatpush.bf16.msra.mxu0 %v1294
    %1310 = vmatpush.bf16.msra.mxu0 %v1293
    %1311 = vmatmul.bf16.gmra.mxu0 %v1298
    %v1312 = vpop.f32.mrf.mxu0
    %v1313 = vadd.f32 %v1276, %v1312
    %v1314 = vpop.f32.mrf.mxu0
    %v1315 = vadd.f32 %v1278, %v1314
    %1316 = vmatmul.bf16.gmra.mxu0 %v1301
    %v1317 = vpop.f32.mrf.mxu0
    %v1318 = vadd.f32 %v1281, %v1317
    %v1319 = vpop.f32.mrf.mxu0
    %v1320 = vadd.f32 %v1283, %v1319
    %1321 = vdwg.mxu0
    %v1322 = vperm.slane %v1210, 0
    %v1323 = vadd.f32 %v1313, %v1322
    %v1324 = vadd.f32 %v1315, %v1322
    %v1325 = vadd.f32 %v1318, %v1322
    %v1326 = vadd.f32 %v1320, %v1322
    %vm1327 = vcmask 23552
    %1328 = vst.msk [vmem:[%s7] sm:$0xff] %vm1327, %v1323
    %1329 = vst.msk [vmem:[%s7 + $0x8] sm:$0xff] %vm1327, %v1324
    %1330 = vst.msk [vmem:[%s7 + $0x10] sm:$0xff] %vm1327, %v1325
    %1331 = vst.msk [vmem:[%s7 + $0x18] sm:$0xff] %vm1327, %v1326
    // Predicated region
    $region46: #{forward.1} parent=1 // pred_check
      _
    $region47: #{forward.1} parent=1 // pred_check_branch
      %1333 = sbr.rel (0) target = $region49
    $region48: #{forward.1} parent=1 // pred_region
      _
    $region49: #{forward.1} parent=1 // pred_fallthru
      _
    // Predicated region
    $region50: #{forward.1} parent=1 // pred_check
      _
    $region51: #{forward.1} parent=1 // pred_check_branch
      %1335 = sbr.rel (0) target = $region53
    $region52: #{forward.1} parent=1 // pred_region
      _
    $region53: #{forward.1} parent=1 // pred_fallthru
      _
    %1336 = vsyncpa [#allocation3], 1
    %1337 = vsyncpa [#allocation5], 1
    %1338 = vsyncpa [#allocation8], 1

</llo_original>
